<compile_context>
chip_gen: v7x
topology: tpu7x:2x2x1
jax: 0.10.0
libtpu: 0.0.40
codegen_flags: <defaults>
</compile_context>

<pallas_src>
import functools
import math

import jax
import jax.numpy as jnp
from jax.experimental import pallas as pl
from jax.experimental.pallas import tpu as pltpu


# ------------------------------ kernel --------------------------------------

def _attention_kernel(xq_ref, xk_ref, xv_ref, w_ref, b_ref, o_ref, *,
                      n_head, d_head, scale):
    """One attention batch (= flat rows [b*seq, (b+1)*seq) of the input slab).

    xq/xk/xv_ref : (seq, d_model)          f32 input rows for this batch
    w_ref        : (4, d_model, d_model)   stacked [wq, wk, wv, wo], MXU dtype
    b_ref        : (4, 1, d_model)         stacked biases, f32
    o_ref        : (seq, d_model)          output rows for this batch
    """
    cdt = w_ref.dtype  # dtype fed to the MXU (bf16 on the fast path, else f32)

    def proj(x_ref, i):
        y = jnp.dot(x_ref[...].astype(cdt), w_ref[i],
                    preferred_element_type=jnp.float32)
        return y + b_ref[i]                       # (seq, d_model) f32

    q = proj(xq_ref, 0)
    k = proj(xk_ref, 1)
    v = proj(xv_ref, 2)
    wo = w_ref[3]

    acc = None
    for h in range(n_head):
        sl = slice(h * d_head, (h + 1) * d_head)  # static lane slice = head h
        qh = q[:, sl].astype(cdt)
        kh = k[:, sl].astype(cdt)
        vh = v[:, sl].astype(cdt)
        # LeakyIntegrator on q and k folded into `scale`:
        #   (li*q).(li*k)/sqrt(d_model) == (q.k) * li^2 / sqrt(d_model)
        # Contraction on the last axis of both operands -> k.T never built.
        s = jnp.einsum("qd,kd->qk", qh, kh,
                       preferred_element_type=jnp.float32) * scale
        s = s - jnp.max(s, axis=-1, keepdims=True)
        e = jnp.exp(s)
        p = e * pl.reciprocal(jnp.sum(e, axis=-1, keepdims=True), approx=True)
        aw = jax.nn.sigmoid(p)                    # ConductanceBasedSynapse, f32
        ho = jnp.einsum("qk,kd->qd", aw.astype(cdt), vh,
                        preferred_element_type=jnp.float32)
        # Head merge fused into the output projection:
        #   concat_h(ho_h) @ Wo == sum_h ho_h @ Wo[h*dh:(h+1)*dh, :]
        contrib = jnp.dot(ho.astype(cdt), wo[sl, :],
                          preferred_element_type=jnp.float32)
        acc = contrib if acc is None else acc + contrib

    o_ref[...] = (acc + b_ref[3]).astype(o_ref.dtype)


# ------------------------------ module wrapper -------------------------------

def leaky_integration_attention(query, key, value, params, *, n_head, tau=0.5,
                                mxu_dtype=jnp.bfloat16):
    """Forward pass of LeakyIntegrationAttention (batch_first=False)."""
    seq_len, batch_size, d_model = query.shape
    assert d_model % n_head == 0
    d_head = d_model // n_head
    n_rows = seq_len * batch_size
    # Block second-to-last dim is seq_len -> keep it a multiple of 8.
    assert seq_len % 8 == 0, "seq_len must be a multiple of 8 for the row blocks"

    # Free row-major flattens; rows are in (seq, batch) order.  Faithful to
    # torch's contiguous .view: attention batch b = rows [b*seq, (b+1)*seq).
    xq = query.reshape(n_rows, d_model)
    xk = key.reshape(n_rows, d_model)
    xv = value.reshape(n_rows, d_model)

    # One stacked tensor each -> single DMA, VMEM-resident across the grid
    # (constant index_map).  Weights carry the MXU dtype; biases stay f32.
    w_all = jnp.stack(
        [params["wq"], params["wk"], params["wv"], params["wo"]]).astype(mxu_dtype)
    b_all = jnp.stack(
        [params["bq"], params["bk"], params["bv"], params["bo"]]
    )[:, None, :].astype(jnp.float32)

    li = 1.0 - 1.0 / tau                     # LeakyIntegrator: x + (-x / tau)
    scale = (li * li) / math.sqrt(d_model)   # applied to q and k -> li^2 on scores

    kern = functools.partial(
        _attention_kernel, n_head=n_head, d_head=d_head, scale=scale)

    flops = batch_size * (8 * seq_len * d_model * d_model
                          + 4 * seq_len * seq_len * d_model)
    transc = 2 * batch_size * n_head * seq_len * seq_len
    bytes_acc = (3 * n_rows * d_model * query.dtype.itemsize
                 + 4 * d_model * d_model * jnp.dtype(mxu_dtype).itemsize
                 + n_rows * d_model * query.dtype.itemsize)

    x_spec = pl.BlockSpec((seq_len, d_model), lambda b: (b, 0))
    out = pl.pallas_call(
        kern,
        grid=(batch_size,),
        in_specs=[
            x_spec, x_spec, x_spec,
            pl.BlockSpec((4, d_model, d_model), lambda b: (0, 0, 0)),
            pl.BlockSpec((4, 1, d_model), lambda b: (0, 0, 0)),
        ],
        out_specs=pl.BlockSpec((None, seq_len, d_model), lambda b: (b, 0, 0)),
        out_shape=jax.ShapeDtypeStruct((batch_size, seq_len, d_model),
                                       query.dtype),
        compiler_params=pltpu.CompilerParams(
            dimension_semantics=("parallel",)),
        cost_estimate=pl.CostEstimate(flops=int(flops),
                                      transcendentals=int(transc),
                                      bytes_accessed=int(bytes_acc)),
    )(xq, xk, xv, w_all, b_all)

    # Kernel output is (batch, seq, d) in the reinterpreted (viewed) order —
    # exactly torch's attn_output before .permute(1, 0, 2).
    # TODO(synk): emitting (seq, batch, d) directly from the kernel needs a
    # (seq, 1, d) output block; a size-1 second-to-last block dim violates the
    # (8,128) block rule, so the final permute stays a tiny XLA transpose.
    # TODO(synk): attn_mask / key_padding_mask / need_weights paths not implemented.
    return jnp.transpose(out, (1, 0, 2))


# ------------------------------ pure-JAX reference ---------------------------

def _reference(query, key, value, params, *, n_head, tau=0.5):
    seq_len, batch_size, d_model = query.shape
    d_head = d_model // n_head
    hi = jax.lax.Precision.HIGHEST

    def proj(x, w, b):
        return (jnp.dot(x.reshape(-1, d_model), w, precision=hi) + b).reshape(x.shape)

    q = proj(query, params["wq"], params["bq"])
    k = proj(key, params["wk"], params["bk"])
    v = proj(value, params["wv"], params["bv"])

    def split_heads(x):
        x = x.reshape(batch_size, seq_len, n_head, d_head)
        return jnp.transpose(x, (0, 2, 1, 3))

    q, k, v = split_heads(q), split_heads(k), split_heads(v)
    li = 1.0 - 1.0 / tau
    q, k = q * li, k * li
    s = jnp.einsum("bhqd,bhkd->bhqk", q, k, precision=hi) / math.sqrt(d_model)
    p = jax.nn.softmax(s, axis=-1)
    w = jax.nn.sigmoid(p)
    o = jnp.einsum("bhqk,bhkd->bhqd", w, v, precision=hi)
    o = jnp.transpose(o, (0, 2, 1, 3)).reshape(batch_size, seq_len, d_model)
    o = jnp.dot(o.reshape(-1, d_model), params["wo"], precision=hi) + params["bo"]
    o = o.reshape(batch_size, seq_len, d_model)
    return jnp.transpose(o, (1, 0, 2))


# ---------------------------------- main -------------------------------------

if __name__ == "__main__":
    d_model = 32
    n_head = 4
    seq_len = 8
    batch = 2

    root = jax.random.PRNGKey(0)
    keys = jax.random.split(root, 11)
    bound = 1.0 / math.sqrt(d_model)

    def u(k, shape):
        return jax.random.uniform(k, shape, jnp.float32, -bound, bound)

    # Weights stored as (d_in, d_out), i.e. the transpose of torch's (out, in);
    # initialized deterministically (synthetic, not a checkpoint load).
    params = {
        "wq": u(keys[0], (d_model, d_model)), "bq": u(keys[1], (d_model,)),
        "wk": u(keys[2], (d_model, d_model)), "bk": u(keys[3], (d_model,)),
        "wv": u(keys[4], (d_model, d_model)), "bv": u(keys[5], (d_model,)),
        "wo": u(keys[6], (d_model, d_model)), "bo": u(keys[7], (d_model,)),
    }

    query = jax.random.normal(keys[8], (seq_len, batch, d_model), jnp.float32)
    key_ = jax.random.normal(keys[9], (seq_len, batch, d_model), jnp.float32)
    value = jax.random.normal(keys[10], (seq_len, batch, d_model), jnp.float32)

    # f32 MXU path checked at tight tolerance; bf16 MXU path (the performance
    # configuration) at a bf16-appropriate tolerance.  tau=0.5 makes li^2 == 1;
    # tau=0.8 exercises the folded LeakyIntegrator scaling.
    configs = [(jnp.float32, 1e-3), (jnp.bfloat16, 3e-2)]
    for tau in (0.5, 0.8):
        ref = _reference(query, key_, value, params, n_head=n_head, tau=tau)
        ref = jax.block_until_ready(ref)
        for mxu_dtype, tol in configs:
            out = leaky_integration_attention(
                query, key_, value, params, n_head=n_head, tau=tau,
                mxu_dtype=mxu_dtype)
            out = jax.block_until_ready(out)
            assert out.shape == (seq_len, batch, d_model), out.shape
            err = float(jnp.max(jnp.abs(out - ref)))
            assert jnp.allclose(out, ref, atol=tol, rtol=tol), (
                tau, str(jnp.dtype(mxu_dtype)), err)

    print("KERNEL_OK")
</pallas_src>

<mosaic_0001>
module attributes {stable_mosaic.version = 11 : i64} {
  func.func @_attention_kernel(%arg0: i32, %arg1: memref<8x32xf32, #tpu.memory_space<vmem>>, %arg2: memref<8x32xf32, #tpu.memory_space<vmem>>, %arg3: memref<8x32xf32, #tpu.memory_space<vmem>>, %arg4: memref<4x32x32xf32, #tpu.memory_space<vmem>>, %arg5: memref<4x1x32xf32, #tpu.memory_space<vmem>>, %arg6: memref<1x8x32xf32, #tpu.memory_space<vmem>>) attributes {dimension_semantics = [#tpu.dimension_semantics<parallel>], iteration_bounds = array<i64: 2>, scalar_prefetch = 0 : i64, scratch_operands = 0 : i64, tpu.core_type = #tpu.core_type<tc>, window_params = [{transform_indices = @transform_0, window_bounds = array<i64: 8, 32>}, {transform_indices = @transform_1, window_bounds = array<i64: 8, 32>}, {transform_indices = @transform_2, window_bounds = array<i64: 8, 32>}, {pipeline_mode = #tpu.pipeline_mode<synchronous>, transform_indices = @transform_3, window_bounds = array<i64: 4, 32, 32>}, {pipeline_mode = #tpu.pipeline_mode<synchronous>, transform_indices = @transform_4, window_bounds = array<i64: 4, 1, 32>}, {transform_indices = @transform_5, window_bounds = array<i64: 1, 8, 32>}]} {
    %c0 = arith.constant 0 : index
    %c0_0 = arith.constant 0 : index
    %0 = vector.load %arg1[%c0, %c0_0] : memref<8x32xf32, #tpu.memory_space<vmem>>, vector<8x32xf32>
    %c0_1 = arith.constant 0 : index
    %c0_2 = arith.constant 0 : index
    %c0_3 = arith.constant 0 : index
    %1 = vector.load %arg4[%c0_1, %c0_2, %c0_3] : memref<4x32x32xf32, #tpu.memory_space<vmem>>, vector<1x32x32xf32>
    %2 = vector.shape_cast %1 : vector<1x32x32xf32> to vector<32x32xf32>
    %cst = arith.constant dense<0.000000e+00> : vector<8x32xf32>
    %3 = tpu.matmul %0, %2, %cst {dimension_numbers = #tpu.dot_dimension_numbers<[1], [0], [0], [1], [0, 0, 1, 1], [], []>} : vector<8x32xf32>, vector<32x32xf32>, vector<8x32xf32> -> vector<8x32xf32>
    %c0_4 = arith.constant 0 : index
    %c0_5 = arith.constant 0 : index
    %c0_6 = arith.constant 0 : index
    %4 = vector.load %arg5[%c0_4, %c0_5, %c0_6] : memref<4x1x32xf32, #tpu.memory_space<vmem>>, vector<1x1x32xf32>
    %5 = vector.shape_cast %4 : vector<1x1x32xf32> to vector<1x32xf32>
    %6 = vector.broadcast %5 : vector<1x32xf32> to vector<8x32xf32>
    %7 = arith.addf %3, %6 : vector<8x32xf32>
    %c0_7 = arith.constant 0 : index
    %c0_8 = arith.constant 0 : index
    %8 = vector.load %arg2[%c0_7, %c0_8] : memref<8x32xf32, #tpu.memory_space<vmem>>, vector<8x32xf32>
    %c1 = arith.constant 1 : index
    %c0_9 = arith.constant 0 : index
    %c0_10 = arith.constant 0 : index
    %9 = vector.load %arg4[%c1, %c0_9, %c0_10] : memref<4x32x32xf32, #tpu.memory_space<vmem>>, vector<1x32x32xf32>
    %10 = vector.shape_cast %9 : vector<1x32x32xf32> to vector<32x32xf32>
    %cst_11 = arith.constant dense<0.000000e+00> : vector<8x32xf32>
    %11 = tpu.matmul %8, %10, %cst_11 {dimension_numbers = #tpu.dot_dimension_numbers<[1], [0], [0], [1], [0, 0, 1, 1], [], []>} : vector<8x32xf32>, vector<32x32xf32>, vector<8x32xf32> -> vector<8x32xf32>
    %c1_12 = arith.constant 1 : index
    %c0_13 = arith.constant 0 : index
    %c0_14 = arith.constant 0 : index
    %12 = vector.load %arg5[%c1_12, %c0_13, %c0_14] : memref<4x1x32xf32, #tpu.memory_space<vmem>>, vector<1x1x32xf32>
    %13 = vector.shape_cast %12 : vector<1x1x32xf32> to vector<1x32xf32>
    %14 = vector.broadcast %13 : vector<1x32xf32> to vector<8x32xf32>
    %15 = arith.addf %11, %14 : vector<8x32xf32>
    %c0_15 = arith.constant 0 : index
    %c0_16 = arith.constant 0 : index
    %16 = vector.load %arg3[%c0_15, %c0_16] : memref<8x32xf32, #tpu.memory_space<vmem>>, vector<8x32xf32>
    %c2 = arith.constant 2 : index
    %c0_17 = arith.constant 0 : index
    %c0_18 = arith.constant 0 : index
    %17 = vector.load %arg4[%c2, %c0_17, %c0_18] : memref<4x32x32xf32, #tpu.memory_space<vmem>>, vector<1x32x32xf32>
    %18 = vector.shape_cast %17 : vector<1x32x32xf32> to vector<32x32xf32>
    %cst_19 = arith.constant dense<0.000000e+00> : vector<8x32xf32>
    %19 = tpu.matmul %16, %18, %cst_19 {dimension_numbers = #tpu.dot_dimension_numbers<[1], [0], [0], [1], [0, 0, 1, 1], [], []>} : vector<8x32xf32>, vector<32x32xf32>, vector<8x32xf32> -> vector<8x32xf32>
    %c2_20 = arith.constant 2 : index
    %c0_21 = arith.constant 0 : index
    %c0_22 = arith.constant 0 : index
    %20 = vector.load %arg5[%c2_20, %c0_21, %c0_22] : memref<4x1x32xf32, #tpu.memory_space<vmem>>, vector<1x1x32xf32>
    %21 = vector.shape_cast %20 : vector<1x1x32xf32> to vector<1x32xf32>
    %22 = vector.broadcast %21 : vector<1x32xf32> to vector<8x32xf32>
    %23 = arith.addf %19, %22 : vector<8x32xf32>
    %c3 = arith.constant 3 : index
    %c0_23 = arith.constant 0 : index
    %c0_24 = arith.constant 0 : index
    %24 = vector.load %arg4[%c3, %c0_23, %c0_24] : memref<4x32x32xf32, #tpu.memory_space<vmem>>, vector<1x32x32xf32>
    %25 = vector.shape_cast %24 : vector<1x32x32xf32> to vector<32x32xf32>
    %26 = vector.extract_strided_slice %7 {offsets = [0, 0], sizes = [8, 8], strides = [1, 1]} : vector<8x32xf32> to vector<8x8xf32>
    %27 = vector.extract_strided_slice %15 {offsets = [0, 0], sizes = [8, 8], strides = [1, 1]} : vector<8x32xf32> to vector<8x8xf32>
    %28 = vector.extract_strided_slice %23 {offsets = [0, 0], sizes = [8, 8], strides = [1, 1]} : vector<8x32xf32> to vector<8x8xf32>
    "tpu.trace_start"() <{level = 10 : i32, message = "qd,kd->qk"}> : () -> ()
    %cst_25 = arith.constant dense<0.000000e+00> : vector<8x8xf32>
    %29 = tpu.matmul %26, %27, %cst_25 {dimension_numbers = #tpu.dot_dimension_numbers<[1], [1], [0], [0], [0, 0, 1, 0], [], []>} : vector<8x8xf32>, vector<8x8xf32>, vector<8x8xf32> -> vector<8x8xf32>
    "tpu.trace_stop"() : () -> ()
    %cst_26 = arith.constant 0.176776692 : f32
    %30 = vector.broadcast %cst_26 : f32 to vector<8x8xf32>
    %31 = arith.mulf %29, %30 : vector<8x8xf32>
    %cst_27 = arith.constant dense<0xFF800000> : vector<8xf32>
    %32 = vector.multi_reduction <maximumf>, %31, %cst_27 [1] : vector<8x8xf32> to vector<8xf32>
    %33 = vector.shape_cast %32 : vector<8xf32> to vector<8x1xf32>
    %34 = vector.broadcast %33 : vector<8x1xf32> to vector<8x8xf32>
    %35 = arith.subf %31, %34 : vector<8x8xf32>
    %36 = math.exp %35 : vector<8x8xf32>
    %cst_28 = arith.constant dense<0.000000e+00> : vector<8xf32>
    %37 = vector.multi_reduction <add>, %36, %cst_28 [1] : vector<8x8xf32> to vector<8xf32>
    %38 = vector.shape_cast %37 : vector<8xf32> to vector<8x1xf32>
    %39 = tpu.reciprocal %38 {approx = true} : vector<8x1xf32> -> vector<8x1xf32>
    %40 = vector.broadcast %39 : vector<8x1xf32> to vector<8x8xf32>
    %41 = arith.mulf %36, %40 : vector<8x8xf32>
    %42 = arith.negf %41 : vector<8x8xf32>
    %43 = math.exp %42 : vector<8x8xf32>
    %cst_29 = arith.constant 1.000000e+00 : f32
    %44 = vector.broadcast %cst_29 : f32 to vector<8x8xf32>
    %45 = arith.addf %44, %43 : vector<8x8xf32>
    %46 = arith.divf %44, %45 : vector<8x8xf32>
    "tpu.trace_start"() <{level = 10 : i32, message = "qk,kd->qd"}> : () -> ()
    %cst_30 = arith.constant dense<0.000000e+00> : vector<8x8xf32>
    %47 = tpu.matmul %46, %28, %cst_30 {dimension_numbers = #tpu.dot_dimension_numbers<[1], [0], [0], [1], [0, 0, 1, 1], [], []>} : vector<8x8xf32>, vector<8x8xf32>, vector<8x8xf32> -> vector<8x8xf32>
    "tpu.trace_stop"() : () -> ()
    %48 = vector.extract_strided_slice %25 {offsets = [0, 0], sizes = [8, 32], strides = [1, 1]} : vector<32x32xf32> to vector<8x32xf32>
    %cst_31 = arith.constant dense<0.000000e+00> : vector<8x32xf32>
    %49 = tpu.matmul %47, %48, %cst_31 {dimension_numbers = #tpu.dot_dimension_numbers<[1], [0], [0], [1], [0, 0, 1, 1], [], []>} : vector<8x8xf32>, vector<8x32xf32>, vector<8x32xf32> -> vector<8x32xf32>
    %50 = vector.extract_strided_slice %7 {offsets = [0, 8], sizes = [8, 8], strides = [1, 1]} : vector<8x32xf32> to vector<8x8xf32>
    %51 = vector.extract_strided_slice %15 {offsets = [0, 8], sizes = [8, 8], strides = [1, 1]} : vector<8x32xf32> to vector<8x8xf32>
    %52 = vector.extract_strided_slice %23 {offsets = [0, 8], sizes = [8, 8], strides = [1, 1]} : vector<8x32xf32> to vector<8x8xf32>
    "tpu.trace_start"() <{level = 10 : i32, message = "qd,kd->qk"}> : () -> ()
    %cst_32 = arith.constant dense<0.000000e+00> : vector<8x8xf32>
    %53 = tpu.matmul %50, %51, %cst_32 {dimension_numbers = #tpu.dot_dimension_numbers<[1], [1], [0], [0], [0, 0, 1, 0], [], []>} : vector<8x8xf32>, vector<8x8xf32>, vector<8x8xf32> -> vector<8x8xf32>
    "tpu.trace_stop"() : () -> ()
    %cst_33 = arith.constant 0.176776692 : f32
    %54 = vector.broadcast %cst_33 : f32 to vector<8x8xf32>
    %55 = arith.mulf %53, %54 : vector<8x8xf32>
    %cst_34 = arith.constant dense<0xFF800000> : vector<8xf32>
    %56 = vector.multi_reduction <maximumf>, %55, %cst_34 [1] : vector<8x8xf32> to vector<8xf32>
    %57 = vector.shape_cast %56 : vector<8xf32> to vector<8x1xf32>
    %58 = vector.broadcast %57 : vector<8x1xf32> to vector<8x8xf32>
    %59 = arith.subf %55, %58 : vector<8x8xf32>
    %60 = math.exp %59 : vector<8x8xf32>
    %cst_35 = arith.constant dense<0.000000e+00> : vector<8xf32>
    %61 = vector.multi_reduction <add>, %60, %cst_35 [1] : vector<8x8xf32> to vector<8xf32>
    %62 = vector.shape_cast %61 : vector<8xf32> to vector<8x1xf32>
    %63 = tpu.reciprocal %62 {approx = true} : vector<8x1xf32> -> vector<8x1xf32>
    %64 = vector.broadcast %63 : vector<8x1xf32> to vector<8x8xf32>
    %65 = arith.mulf %60, %64 : vector<8x8xf32>
    %66 = arith.negf %65 : vector<8x8xf32>
    %67 = math.exp %66 : vector<8x8xf32>
    %cst_36 = arith.constant 1.000000e+00 : f32
    %68 = vector.broadcast %cst_36 : f32 to vector<8x8xf32>
    %69 = arith.addf %68, %67 : vector<8x8xf32>
    %70 = arith.divf %68, %69 : vector<8x8xf32>
    "tpu.trace_start"() <{level = 10 : i32, message = "qk,kd->qd"}> : () -> ()
    %cst_37 = arith.constant dense<0.000000e+00> : vector<8x8xf32>
    %71 = tpu.matmul %70, %52, %cst_37 {dimension_numbers = #tpu.dot_dimension_numbers<[1], [0], [0], [1], [0, 0, 1, 1], [], []>} : vector<8x8xf32>, vector<8x8xf32>, vector<8x8xf32> -> vector<8x8xf32>
    "tpu.trace_stop"() : () -> ()
    %72 = vector.extract_strided_slice %25 {offsets = [8, 0], sizes = [8, 32], strides = [1, 1]} : vector<32x32xf32> to vector<8x32xf32>
    %cst_38 = arith.constant dense<0.000000e+00> : vector<8x32xf32>
    %73 = tpu.matmul %71, %72, %cst_38 {dimension_numbers = #tpu.dot_dimension_numbers<[1], [0], [0], [1], [0, 0, 1, 1], [], []>} : vector<8x8xf32>, vector<8x32xf32>, vector<8x32xf32> -> vector<8x32xf32>
    %74 = arith.addf %49, %73 : vector<8x32xf32>
    %75 = vector.extract_strided_slice %7 {offsets = [0, 16], sizes = [8, 8], strides = [1, 1]} : vector<8x32xf32> to vector<8x8xf32>
    %76 = vector.extract_strided_slice %15 {offsets = [0, 16], sizes = [8, 8], strides = [1, 1]} : vector<8x32xf32> to vector<8x8xf32>
    %77 = vector.extract_strided_slice %23 {offsets = [0, 16], sizes = [8, 8], strides = [1, 1]} : vector<8x32xf32> to vector<8x8xf32>
    "tpu.trace_start"() <{level = 10 : i32, message = "qd,kd->qk"}> : () -> ()
    %cst_39 = arith.constant dense<0.000000e+00> : vector<8x8xf32>
    %78 = tpu.matmul %75, %76, %cst_39 {dimension_numbers = #tpu.dot_dimension_numbers<[1], [1], [0], [0], [0, 0, 1, 0], [], []>} : vector<8x8xf32>, vector<8x8xf32>, vector<8x8xf32> -> vector<8x8xf32>
    "tpu.trace_stop"() : () -> ()
    %cst_40 = arith.constant 0.176776692 : f32
    %79 = vector.broadcast %cst_40 : f32 to vector<8x8xf32>
    %80 = arith.mulf %78, %79 : vector<8x8xf32>
    %cst_41 = arith.constant dense<0xFF800000> : vector<8xf32>
    %81 = vector.multi_reduction <maximumf>, %80, %cst_41 [1] : vector<8x8xf32> to vector<8xf32>
    %82 = vector.shape_cast %81 : vector<8xf32> to vector<8x1xf32>
    %83 = vector.broadcast %82 : vector<8x1xf32> to vector<8x8xf32>
    %84 = arith.subf %80, %83 : vector<8x8xf32>
    %85 = math.exp %84 : vector<8x8xf32>
    %cst_42 = arith.constant dense<0.000000e+00> : vector<8xf32>
    %86 = vector.multi_reduction <add>, %85, %cst_42 [1] : vector<8x8xf32> to vector<8xf32>
    %87 = vector.shape_cast %86 : vector<8xf32> to vector<8x1xf32>
    %88 = tpu.reciprocal %87 {approx = true} : vector<8x1xf32> -> vector<8x1xf32>
    %89 = vector.broadcast %88 : vector<8x1xf32> to vector<8x8xf32>
    %90 = arith.mulf %85, %89 : vector<8x8xf32>
    %91 = arith.negf %90 : vector<8x8xf32>
    %92 = math.exp %91 : vector<8x8xf32>
    %cst_43 = arith.constant 1.000000e+00 : f32
    %93 = vector.broadcast %cst_43 : f32 to vector<8x8xf32>
    %94 = arith.addf %93, %92 : vector<8x8xf32>
    %95 = arith.divf %93, %94 : vector<8x8xf32>
    "tpu.trace_start"() <{level = 10 : i32, message = "qk,kd->qd"}> : () -> ()
    %cst_44 = arith.constant dense<0.000000e+00> : vector<8x8xf32>
    %96 = tpu.matmul %95, %77, %cst_44 {dimension_numbers = #tpu.dot_dimension_numbers<[1], [0], [0], [1], [0, 0, 1, 1], [], []>} : vector<8x8xf32>, vector<8x8xf32>, vector<8x8xf32> -> vector<8x8xf32>
    "tpu.trace_stop"() : () -> ()
    %97 = vector.extract_strided_slice %25 {offsets = [16, 0], sizes = [8, 32], strides = [1, 1]} : vector<32x32xf32> to vector<8x32xf32>
    %cst_45 = arith.constant dense<0.000000e+00> : vector<8x32xf32>
    %98 = tpu.matmul %96, %97, %cst_45 {dimension_numbers = #tpu.dot_dimension_numbers<[1], [0], [0], [1], [0, 0, 1, 1], [], []>} : vector<8x8xf32>, vector<8x32xf32>, vector<8x32xf32> -> vector<8x32xf32>
    %99 = arith.addf %74, %98 : vector<8x32xf32>
    %100 = vector.extract_strided_slice %7 {offsets = [0, 24], sizes = [8, 8], strides = [1, 1]} : vector<8x32xf32> to vector<8x8xf32>
    %101 = vector.extract_strided_slice %15 {offsets = [0, 24], sizes = [8, 8], strides = [1, 1]} : vector<8x32xf32> to vector<8x8xf32>
    %102 = vector.extract_strided_slice %23 {offsets = [0, 24], sizes = [8, 8], strides = [1, 1]} : vector<8x32xf32> to vector<8x8xf32>
    "tpu.trace_start"() <{level = 10 : i32, message = "qd,kd->qk"}> : () -> ()
    %cst_46 = arith.constant dense<0.000000e+00> : vector<8x8xf32>
    %103 = tpu.matmul %100, %101, %cst_46 {dimension_numbers = #tpu.dot_dimension_numbers<[1], [1], [0], [0], [0, 0, 1, 0], [], []>} : vector<8x8xf32>, vector<8x8xf32>, vector<8x8xf32> -> vector<8x8xf32>
    "tpu.trace_stop"() : () -> ()
    %cst_47 = arith.constant 0.176776692 : f32
    %104 = vector.broadcast %cst_47 : f32 to vector<8x8xf32>
    %105 = arith.mulf %103, %104 : vector<8x8xf32>
    %cst_48 = arith.constant dense<0xFF800000> : vector<8xf32>
    %106 = vector.multi_reduction <maximumf>, %105, %cst_48 [1] : vector<8x8xf32> to vector<8xf32>
    %107 = vector.shape_cast %106 : vector<8xf32> to vector<8x1xf32>
    %108 = vector.broadcast %107 : vector<8x1xf32> to vector<8x8xf32>
    %109 = arith.subf %105, %108 : vector<8x8xf32>
    %110 = math.exp %109 : vector<8x8xf32>
    %cst_49 = arith.constant dense<0.000000e+00> : vector<8xf32>
    %111 = vector.multi_reduction <add>, %110, %cst_49 [1] : vector<8x8xf32> to vector<8xf32>
    %112 = vector.shape_cast %111 : vector<8xf32> to vector<8x1xf32>
    %113 = tpu.reciprocal %112 {approx = true} : vector<8x1xf32> -> vector<8x1xf32>
    %114 = vector.broadcast %113 : vector<8x1xf32> to vector<8x8xf32>
    %115 = arith.mulf %110, %114 : vector<8x8xf32>
    %116 = arith.negf %115 : vector<8x8xf32>
    %117 = math.exp %116 : vector<8x8xf32>
    %cst_50 = arith.constant 1.000000e+00 : f32
    %118 = vector.broadcast %cst_50 : f32 to vector<8x8xf32>
    %119 = arith.addf %118, %117 : vector<8x8xf32>
    %120 = arith.divf %118, %119 : vector<8x8xf32>
    "tpu.trace_start"() <{level = 10 : i32, message = "qk,kd->qd"}> : () -> ()
    %cst_51 = arith.constant dense<0.000000e+00> : vector<8x8xf32>
    %121 = tpu.matmul %120, %102, %cst_51 {dimension_numbers = #tpu.dot_dimension_numbers<[1], [0], [0], [1], [0, 0, 1, 1], [], []>} : vector<8x8xf32>, vector<8x8xf32>, vector<8x8xf32> -> vector<8x8xf32>
    "tpu.trace_stop"() : () -> ()
    %122 = vector.extract_strided_slice %25 {offsets = [24, 0], sizes = [8, 32], strides = [1, 1]} : vector<32x32xf32> to vector<8x32xf32>
    %cst_52 = arith.constant dense<0.000000e+00> : vector<8x32xf32>
    %123 = tpu.matmul %121, %122, %cst_52 {dimension_numbers = #tpu.dot_dimension_numbers<[1], [0], [0], [1], [0, 0, 1, 1], [], []>} : vector<8x8xf32>, vector<8x32xf32>, vector<8x32xf32> -> vector<8x32xf32>
    %124 = arith.addf %99, %123 : vector<8x32xf32>
    %c3_53 = arith.constant 3 : index
    %c0_54 = arith.constant 0 : index
    %c0_55 = arith.constant 0 : index
    %125 = vector.load %arg5[%c3_53, %c0_54, %c0_55] : memref<4x1x32xf32, #tpu.memory_space<vmem>>, vector<1x1x32xf32>
    %126 = vector.shape_cast %125 : vector<1x1x32xf32> to vector<1x32xf32>
    %127 = vector.broadcast %126 : vector<1x32xf32> to vector<8x32xf32>
    %128 = arith.addf %124, %127 : vector<8x32xf32>
    %c0_56 = arith.constant 0 : index
    %c0_57 = arith.constant 0 : index
    %c0_58 = arith.constant 0 : index
    %129 = vector.load %arg6[%c0_56, %c0_57, %c0_58] : memref<1x8x32xf32, #tpu.memory_space<vmem>>, vector<1x8x32xf32>
    %130 = vector.shape_cast %129 : vector<1x8x32xf32> to vector<8x32xf32>
    %131 = vector.shape_cast %128 : vector<8x32xf32> to vector<1x8x32xf32>
    tpu.vector_store %arg6[%c0_56, %c0_57, %c0_58], %131 {strides = array<i32>} : memref<1x8x32xf32, #tpu.memory_space<vmem>>, vector<1x8x32xf32>,
    return
  }
  func.func @transform_0(%arg0: i32) -> (i32, i32) {
    %c0_i32 = arith.constant 0 : i32
    %c0_i32_0 = arith.constant 0 : i32
    return %arg0, %c0_i32 : i32, i32
  }
  func.func @transform_1(%arg0: i32) -> (i32, i32) {
    %c0_i32 = arith.constant 0 : i32
    %c0_i32_0 = arith.constant 0 : i32
    return %arg0, %c0_i32 : i32, i32
  }
  func.func @transform_2(%arg0: i32) -> (i32, i32) {
    %c0_i32 = arith.constant 0 : i32
    %c0_i32_0 = arith.constant 0 : i32
    return %arg0, %c0_i32 : i32, i32
  }
  func.func @transform_3(%arg0: i32) -> (i32, i32, i32) {
    %c0_i32 = arith.constant 0 : i32
    %c0_i32_0 = arith.constant 0 : i32
    %c0_i32_1 = arith.constant 0 : i32
    %c0_i32_2 = arith.constant 0 : i32
    return %c0_i32, %c0_i32_0, %c0_i32_1 : i32, i32, i32
  }
  func.func @transform_4(%arg0: i32) -> (i32, i32, i32) {
    %c0_i32 = arith.constant 0 : i32
    %c0_i32_0 = arith.constant 0 : i32
    %c0_i32_1 = arith.constant 0 : i32
    %c0_i32_2 = arith.constant 0 : i32
    return %c0_i32, %c0_i32_0, %c0_i32_1 : i32, i32, i32
  }
  func.func @transform_5(%arg0: i32) -> (i32, i32, i32) {
    %c0_i32 = arith.constant 0 : i32
    %c0_i32_0 = arith.constant 0 : i32
    %c0_i32_1 = arith.constant 0 : i32
    return %arg0, %c0_i32, %c0_i32_0 : i32, i32, i32
  }
}

</mosaic_0001>

<llo_original>
// kernel: tpu_custom_call.1
$region0: #{tpu_custom_call.1}
  #allocation0 [shape = 'u32[]', space=smem, size = 0x4, offset = 0x4, fixed_abs, tag = 'smem constant byte address 0x4 - core index']
  #allocation1 [shape = 'u32[144,128]{1,0:T(1,128)}', space=vmem, size = 0x12000, scoped, tag = 'internal scratch']
  %s0 = inlined_call_operand.hbm [shape: f32[16,32], index: 0, kind: input, shape index: {}]
  %s1 = inlined_call_operand.hbm [shape: f32[16,32], index: 1, kind: input, shape index: {}]
  %s2 = inlined_call_operand.hbm [shape: f32[16,32], index: 2, kind: input, shape index: {}]
  %s3 = inlined_call_operand.hbm [shape: f32[4,32,32], index: 3, kind: input, shape index: {}]
  %s4 = inlined_call_operand.vmem [shape: f32[4,1,32], index: 4, kind: input, shape index: {}]
  %s5 = inlined_call_operand.hbm [shape: f32[2,8,32], index: 5, kind: output, shape index: {}]
  %s6 = sld [smem:[#allocation0]]
  $region69: #{tpu_custom_call.1} parent=0
    _
  %s8 = ssub.s32 1, %s6
  %s9 = scalar_select 0, %s8, %s6
  $region1: #{tpu_custom_call.1} parent=0
    #allocation2 [shape = 'u8[8192]{0}', space=vmem, size = 0x2000, scoped, tag = 'input window, operand 0']
    #allocation3 [shape = 's32[2]{0}', space=sflag, size = 0x8, scoped, tag = 'scoped memory for tpu_custom_call.1']
    #allocation4 [shape = 's32[2]{0}', space=sflag, size = 0x8, scoped, tag = 'scoped memory for tpu_custom_call.1']
    #allocation5 [shape = 'u8[8192]{0}', space=vmem, size = 0x2000, scoped, tag = 'input window, operand 1']
    #allocation6 [shape = 's32[2]{0}', space=sflag, size = 0x8, scoped, tag = 'scoped memory for tpu_custom_call.1']
    #allocation7 [shape = 'u8[8192]{0}', space=vmem, size = 0x2000, scoped, tag = 'input window, operand 2']
    #allocation8 [shape = 'u8[65536]{0}', space=vmem, size = 0x10000, scoped, tag = 'input window, operand 3, single buffered']
    #allocation9 [shape = 's32[1]{0}', space=sflag, size = 0x4, scoped, tag = 'scoped memory for tpu_custom_call.1']
    #allocation10 [shape = 'u8[8192]{0}', space=vmem, size = 0x2000, scoped, tag = 'output window, operand 0']
    %10 = vsyncpa [#allocation3], 0
    %s11 = scalar_lea.sflag [#allocation3], 1
    %12 = vsyncpa %s11, 0
    %13 = vsyncpa [#allocation6], 0
    %s14 = scalar_lea.sflag [#allocation6], 1
    %15 = vsyncpa %s14, 0
    %16 = vsyncpa [#allocation9], 0
    %17 = vsyncpa [#allocation4], 0
    %s18 = scalar_lea.sflag [#allocation4], 1
    %19 = vsyncpa %s18, 0
    loop: start=0, step=1, limit=4
    $region2: #{tpu_custom_call.1} parent=1 // loop_pre_header
      _
    $region3: #{tpu_custom_call.1} parent=1 // loop_header
      %s21 = sphi 0, %s25
      %p22 = scmp.ge.s32.totalorder %s21, 4
      %s31 = sphi 0, %s33
      %s34 = sphi 0, %s31
      %s35 = sphi 0, %s34
      %s51 = sphi 0, %s35
      %s57 = sphi 0, %s59
      %s60 = sphi 0, %s57
      %s61 = sphi 0, %s60
      %s77 = sphi 0, %s61
      %s83 = sphi 0, %s85
      %s86 = sphi 0, %s83
      %s87 = sphi 0, %s86
      %s103 = sphi 0, %s87
      %s107 = sphi 0, %s107
      %s109 = sphi 0, %s107
      %s110 = sphi 0, %s109
      %s124 = sphi 0, %s110
      %s128 = sphi 0, %s128
      %s130 = sphi 0, %s128
      %s131 = sphi 0, %s130
      %s145 = sphi 0, %s131
      %s151 = sphi 0, %s153
      %s154 = sphi 0, %s151
      %s155 = sphi 0, %s154
      %s171 = sphi 0, %s155
    $region4: #{tpu_custom_call.1} parent=1 // loop_header_branch
      %24 = sbr.rel (%p22) target = $region8
    $region5: #{tpu_custom_call.1} parent=1 // loop_body
      %s26 = ssub.s32 %s21, 1
      %s27 = ssub.s32 %s21, 2
      %s28 = sadd.s32 %s21, 1
      %s29 = ssub.s32 %s21, %s28
      %p30 = scmp.eq.s32.totalorder %s29, 0
      %s32 = sadd.s32 %s31, 1
      %s33 = scalar_select %p30, %s31, %s32
      %p36 = pneg %p30
      %p37 = scmp.eq.s32.totalorder %s21, 1
      %p38 = por %p36, %p37
      %p39 = scmp.ne.s32.totalorder %s31, %s34
      %p40 = scmp.eq.s32.totalorder %s21, 0
      %p41 = por %p39, %p40
      %p42 = scmp.ne.s32.totalorder %s31, %s34
      %p43 = scmp.eq.s32.totalorder %s26, 1
      %p44 = por %p42, %p43
      %p45 = scmp.ne.s32.totalorder %s34, %s35
      %p46 = scmp.eq.s32.totalorder %s26, 0
      %p47 = por %p45, %p46
      %p48 = scmp.ne.s32.totalorder %s34, %s35
      %p49 = scmp.eq.s32.totalorder %s27, 1
      %p50 = por %p48, %p49
      %p52 = scmp.ne.s32.totalorder %s35, %s51
      %p53 = scmp.eq.s32.totalorder %s27, 0
      %p54 = por %p52, %p53
      %s55 = ssub.s32 %s21, %s28
      %p56 = scmp.eq.s32.totalorder %s55, 0
      %s58 = sadd.s32 %s57, 1
      %s59 = scalar_select %p56, %s57, %s58
      %p62 = pneg %p56
      %p63 = scmp.eq.s32.totalorder %s21, 1
      %p64 = por %p62, %p63
      %p65 = scmp.ne.s32.totalorder %s57, %s60
      %p66 = scmp.eq.s32.totalorder %s21, 0
      %p67 = por %p65, %p66
      %p68 = scmp.ne.s32.totalorder %s57, %s60
      %p69 = scmp.eq.s32.totalorder %s26, 1
      %p70 = por %p68, %p69
      %p71 = scmp.ne.s32.totalorder %s60, %s61
      %p72 = scmp.eq.s32.totalorder %s26, 0
      %p73 = por %p71, %p72
      %p74 = scmp.ne.s32.totalorder %s60, %s61
      %p75 = scmp.eq.s32.totalorder %s27, 1
      %p76 = por %p74, %p75
      %p78 = scmp.ne.s32.totalorder %s61, %s77
      %p79 = scmp.eq.s32.totalorder %s27, 0
      %p80 = por %p78, %p79
      %s81 = ssub.s32 %s21, %s28
      %p82 = scmp.eq.s32.totalorder %s81, 0
      %s84 = sadd.s32 %s83, 1
      %s85 = scalar_select %p82, %s83, %s84
      %p88 = pneg %p82
      %p89 = scmp.eq.s32.totalorder %s21, 1
      %p90 = por %p88, %p89
      %p91 = scmp.ne.s32.totalorder %s83, %s86
      %p92 = scmp.eq.s32.totalorder %s21, 0
      %p93 = por %p91, %p92
      %p94 = scmp.ne.s32.totalorder %s83, %s86
      %p95 = scmp.eq.s32.totalorder %s26, 1
      %p96 = por %p94, %p95
      %p97 = scmp.ne.s32.totalorder %s86, %s87
      %p98 = scmp.eq.s32.totalorder %s26, 0
      %p99 = por %p97, %p98
      %p100 = scmp.ne.s32.totalorder %s86, %s87
      %p101 = scmp.eq.s32.totalorder %s27, 1
      %p102 = por %p100, %p101
      %p104 = scmp.ne.s32.totalorder %s87, %s103
      %p105 = scmp.eq.s32.totalorder %s27, 0
      %p106 = por %p104, %p105
      %s108 = sadd.s32 %s107, 1
      %p111 = scmp.eq.s32.totalorder %s21, 1
      %p112 = scmp.ne.s32.totalorder %s107, %s109
      %p113 = scmp.eq.s32.totalorder %s21, 0
      %p114 = por %p112, %p113
      %p115 = scmp.ne.s32.totalorder %s107, %s109
      %p116 = scmp.eq.s32.totalorder %s26, 1
      %p117 = por %p115, %p116
      %p118 = scmp.ne.s32.totalorder %s109, %s110
      %p119 = scmp.eq.s32.totalorder %s26, 0
      %p120 = por %p118, %p119
      %p121 = scmp.ne.s32.totalorder %s109, %s110
      %p122 = scmp.eq.s32.totalorder %s27, 1
      %p123 = por %p121, %p122
      %p125 = scmp.ne.s32.totalorder %s110, %s124
      %p126 = scmp.eq.s32.totalorder %s27, 0
      %p127 = por %p125, %p126
      %s129 = sadd.s32 %s128, 1
      %p132 = scmp.eq.s32.totalorder %s21, 1
      %p133 = scmp.ne.s32.totalorder %s128, %s130
      %p134 = scmp.eq.s32.totalorder %s21, 0
      %p135 = por %p133, %p134
      %p136 = scmp.ne.s32.totalorder %s128, %s130
      %p137 = scmp.eq.s32.totalorder %s26, 1
      %p138 = por %p136, %p137
      %p139 = scmp.ne.s32.totalorder %s130, %s131
      %p140 = scmp.eq.s32.totalorder %s26, 0
      %p141 = por %p139, %p140
      %p142 = scmp.ne.s32.totalorder %s130, %s131
      %p143 = scmp.eq.s32.totalorder %s27, 1
      %p144 = por %p142, %p143
      %p146 = scmp.ne.s32.totalorder %s131, %s145
      %p147 = scmp.eq.s32.totalorder %s27, 0
      %p148 = por %p146, %p147
      %s149 = ssub.s32 %s21, %s28
      %p150 = scmp.eq.s32.totalorder %s149, 0
      %s152 = sadd.s32 %s151, 1
      %s153 = scalar_select %p150, %s151, %s152
      %p156 = pneg %p150
      %p157 = scmp.eq.s32.totalorder %s21, 1
      %p158 = por %p156, %p157
      %p159 = scmp.ne.s32.totalorder %s151, %s154
      %p160 = scmp.eq.s32.totalorder %s21, 0
      %p161 = por %p159, %p160
      %p162 = scmp.ne.s32.totalorder %s151, %s154
      %p163 = scmp.eq.s32.totalorder %s26, 1
      %p164 = por %p162, %p163
      %p165 = scmp.ne.s32.totalorder %s154, %s155
      %p166 = scmp.eq.s32.totalorder %s26, 0
      %p167 = por %p165, %p166
      %p168 = scmp.ne.s32.totalorder %s154, %s155
      %p169 = scmp.eq.s32.totalorder %s27, 1
      %p170 = por %p168, %p169
      %p172 = scmp.ne.s32.totalorder %s155, %s171
      %p173 = scmp.eq.s32.totalorder %s27, 0
      %p174 = por %p172, %p173
      %p175 = scmp.le.s32.totalorder 1, %s21
      %p176 = scmp.lt.s32.totalorder %s21, 3
      %p177 = pnand %p175, %p176
      %p178 = pneg %p177
      // Predicated region
      $region9: #{tpu_custom_call.1} parent=5 // pred_check
        _
      $region10: #{tpu_custom_call.1} parent=5 // pred_check_branch
        %180 = sbr.rel (%p177) target = $region12
      $region11: #{tpu_custom_call.1} parent=5 // pred_region
        %s181 = ssub.s32 %s21, 1
        // Predicated region
        $region13: #{tpu_custom_call.1} parent=11 // pred_check
          %p182 = pneg %p120
        $region14: #{tpu_custom_call.1} parent=11 // pred_check_branch
          %184 = sbr.rel (%p182) target = $region16
        $region15: #{tpu_custom_call.1} parent=11 // pred_region
          %s186 = ssub.s32 2048, 2048
          %187 = vsyncadd [#allocation9], %s186
          %s188 = sshll.u32 [#allocation8], 4
          %s189 = int_to_ptr.vmem [resolvable:$true] %s188
          %194 = dma.hbm_to_vmem [thread:$0]  %s3, 2048, %s189, [#allocation9], 128, 128, 8
        $region16: #{tpu_custom_call.1} parent=11 // pred_fallthru
          _
        // Predicated region
        $region17: #{tpu_custom_call.1} parent=11 // pred_check
          %p195 = pneg %p141
        $region18: #{tpu_custom_call.1} parent=11 // pred_check_branch
          %197 = sbr.rel (%p195) target = $region20
        $region19: #{tpu_custom_call.1} parent=11 // pred_region
          _
        $region20: #{tpu_custom_call.1} parent=11 // pred_fallthru
          _
      $region12: #{tpu_custom_call.1} parent=5 // pred_fallthru
        _
      %p198 = scmp.lt.s32.totalorder %s21, 2
      // Predicated region
      $region21: #{tpu_custom_call.1} parent=5 // pred_check
        %p199 = pneg %p198
      $region22: #{tpu_custom_call.1} parent=5 // pred_check_branch
        %201 = sbr.rel (%p199) target = $region24
      $region23: #{tpu_custom_call.1} parent=5 // pred_region
        // Predicated region
        $region25: #{tpu_custom_call.1} parent=23 // pred_check
          %p202 = pneg %p41
        $region26: #{tpu_custom_call.1} parent=23 // pred_check_branch
          %204 = sbr.rel (%p202) target = $region28
        $region27: #{tpu_custom_call.1} parent=23 // pred_region
          %s205 = sand.u32 %s31, 1
          %s206 = scalar_lea.sflag [#allocation3], %s205
          %s207 = sand.u32 %s31, 1
          %s208 = smul.addr %s207, 8
          %s209 = scalar_lea.vmem [#allocation2], %s208
          %s211 = ssub.s32 128, 128
          %212 = vsyncadd %s206, %s211
          %s213 = smul.addr %s21, 128
          %s214 = scalar_lea.hbm %s0, %s213
          %s216 = sshll.u32 %s209, 4
          %s217 = int_to_ptr.vmem [resolvable:$true] %s216
          %219 = dma.hbm_to_vmem [thread:$0]  %s214, 128, %s217, %s206
        $region28: #{tpu_custom_call.1} parent=23 // pred_fallthru
          _
        // Predicated region
        $region29: #{tpu_custom_call.1} parent=23 // pred_check
          %p220 = pneg %p67
        $region30: #{tpu_custom_call.1} parent=23 // pred_check_branch
          %222 = sbr.rel (%p220) target = $region32
        $region31: #{tpu_custom_call.1} parent=23 // pred_region
          %s223 = sand.u32 %s21, 1
          %s224 = scalar_lea.sflag [#allocation6], %s223
          %s225 = sand.u32 %s57, 1
          %s226 = smul.addr %s225, 8
          %s227 = scalar_lea.vmem [#allocation5], %s226
          %s229 = ssub.s32 128, 128
          %230 = vsyncadd %s224, %s229
          %s231 = smul.addr %s21, 128
          %s232 = scalar_lea.hbm %s1, %s231
          %s234 = sshll.u32 %s227, 4
          %s235 = int_to_ptr.vmem [resolvable:$true] %s234
          %237 = dma.hbm_to_vmem [thread:$0]  %s232, 128, %s235, %s224
        $region32: #{tpu_custom_call.1} parent=23 // pred_fallthru
          _
        // Predicated region
        $region33: #{tpu_custom_call.1} parent=23 // pred_check
          %p238 = pneg %p93
        $region34: #{tpu_custom_call.1} parent=23 // pred_check_branch
          %240 = sbr.rel (%p238) target = $region36
        $region35: #{tpu_custom_call.1} parent=23 // pred_region
          %s241 = sand.u32 %s21, 1
          %s242 = scalar_lea.sflag [#allocation6], %s241
          %s243 = sand.u32 %s83, 1
          %s244 = smul.addr %s243, 8
          %s245 = scalar_lea.vmem [#allocation7], %s244
          %s247 = ssub.s32 128, 128
          %248 = vsyncadd %s242, %s247
          %s249 = smul.addr %s21, 128
          %s250 = scalar_lea.hbm %s2, %s249
          %s252 = sshll.u32 %s245, 4
          %s253 = int_to_ptr.vmem [resolvable:$true] %s252
          %255 = dma.hbm_to_vmem [thread:$0]  %s250, 128, %s253, %s242
        $region36: #{tpu_custom_call.1} parent=23 // pred_fallthru
          _
      $region24: #{tpu_custom_call.1} parent=5 // pred_fallthru
        _
      %p256 = scmp.le.s32.totalorder 1, %s21
      %p257 = scmp.lt.s32.totalorder %s21, 3
      %p258 = pnand %p256, %p257
      %p259 = pneg %p258
      // Predicated region
      $region37: #{tpu_custom_call.1} parent=5 // pred_check
        _
      $region38: #{tpu_custom_call.1} parent=5 // pred_check_branch
        %261 = sbr.rel (%p258) target = $region40
      $region39: #{tpu_custom_call.1} parent=5 // pred_region
        %s262 = ssub.s32 %s21, 1
        %s263 = sand.u32 %s34, 1
        %s264 = scalar_lea.sflag [#allocation3], %s263
        %s265 = sand.u32 %s34, 1
        %s266 = smul.addr %s265, 8
        %s267 = scalar_lea.vmem [#allocation2], %s266
        // Predicated region
        $region41: #{tpu_custom_call.1} parent=39 // pred_check
          %p268 = pneg %p47
        $region42: #{tpu_custom_call.1} parent=39 // pred_check_branch
          %270 = sbr.rel (%p268) target = $region44
        $region43: #{tpu_custom_call.1} parent=39 // pred_region
          %271 = dma.done %s264, 128
        $region44: #{tpu_custom_call.1} parent=39 // pred_fallthru
          _
        %s272 = sand.u32 %s26, 1
        %s273 = scalar_lea.sflag [#allocation6], %s272
        %s274 = sand.u32 %s60, 1
        %s275 = smul.addr %s274, 8
        %s276 = scalar_lea.vmem [#allocation5], %s275
        // Predicated region
        $region45: #{tpu_custom_call.1} parent=39 // pred_check
          %p277 = pneg %p73
        $region46: #{tpu_custom_call.1} parent=39 // pred_check_branch
          %279 = sbr.rel (%p277) target = $region48
        $region47: #{tpu_custom_call.1} parent=39 // pred_region
          %280 = dma.done %s273, 128
        $region48: #{tpu_custom_call.1} parent=39 // pred_fallthru
          _
        %s281 = sand.u32 %s26, 1
        %s282 = scalar_lea.sflag [#allocation6], %s281
        %s283 = sand.u32 %s86, 1
        %s284 = smul.addr %s283, 8
        %s285 = scalar_lea.vmem [#allocation7], %s284
        // Predicated region
        $region49: #{tpu_custom_call.1} parent=39 // pred_check
          %p286 = pneg %p99
        $region50: #{tpu_custom_call.1} parent=39 // pred_check_branch
          %288 = sbr.rel (%p286) target = $region52
        $region51: #{tpu_custom_call.1} parent=39 // pred_region
          %289 = dma.done %s282, 128
        $region52: #{tpu_custom_call.1} parent=39 // pred_fallthru
          _
        // Predicated region
        $region53: #{tpu_custom_call.1} parent=39 // pred_check
          %p290 = pneg %p120
        $region54: #{tpu_custom_call.1} parent=39 // pred_check_branch
          %292 = sbr.rel (%p290) target = $region56
        $region55: #{tpu_custom_call.1} parent=39 // pred_region
          %293 = dma.done [#allocation9], 2048
        $region56: #{tpu_custom_call.1} parent=39 // pred_fallthru
          _
        %s294 = sand.u32 %s34, 1
        %s295 = scalar_lea.sflag [#allocation3], %s294
        %s296 = sand.u32 %s34, 1
        %s297 = smul.addr %s296, 8
        %s298 = scalar_lea.vmem [#allocation2], %s297
        %p299 = pneg %p47
        %p300 = pneg %p44
        %s301 = sand.u32 %s26, 1
        %s302 = scalar_lea.sflag [#allocation6], %s301
        %s303 = sand.u32 %s60, 1
        %s304 = smul.addr %s303, 8
        %s305 = scalar_lea.vmem [#allocation5], %s304
        %p306 = pneg %p73
        %p307 = pneg %p70
        %s308 = sand.u32 %s26, 1
        %s309 = scalar_lea.sflag [#allocation6], %s308
        %s310 = sand.u32 %s86, 1
        %s311 = smul.addr %s310, 8
        %s312 = scalar_lea.vmem [#allocation7], %s311
        %p313 = pneg %p99
        %p314 = pneg %p96
        %p315 = pneg %p120
        %p316 = pneg %p117
        %p317 = pneg %p141
        %p318 = pneg %p138
        %p319 = pneg %p167
        %p320 = pneg %p164
        %s321 = sand.u32 %s154, 1
        %s322 = scalar_lea.sflag [#allocation4], %s321
        %s323 = sand.u32 %s154, 1
        %s324 = smul.addr %s323, 8
        %s325 = scalar_lea.vmem [#allocation10], %s324
        %v326 = vld [vmem:[%s267] sm:$0xff]
        %v327 = vld [vmem:[#allocation8] sm:$0xff]
        %v328 = vld [vmem:[#allocation8 + $0x8] sm:$0xff]
        %v329 = vld [vmem:[#allocation8 + $0x10] sm:$0xff]
        %v330 = vld [vmem:[#allocation8 + $0x18] sm:$0xff]
        %v331 = vld [vmem:[%s4] sm:$0x1]
        %v333 = vlaneseq
        %v334 = vshrl.u32 %v333, 7
        %v335 = vsub.s32 0, %v334
        %v336 = vrot.slane %v331, %v335
        %vm338 = vcmask 261120
        %v340 = vsel %vm338, %v326, 0
        %342 = vmatprep.subr.mxu0 0.0
        %343 = vmatpush1.msra.mxu0 %v327
        %344 = vmatprep.subr.mxu0 0.0
        %345 = vmatpush1.msra.mxu0 %v328
        %346 = vmatprep.subr.mxu0 0.0
        %347 = vmatpush1.msra.mxu0 %v329
        %348 = vmatprep.subr.mxu0 0.0
        %349 = vmatpush1.msra.mxu0 %v330
        %350 = vmatprep.subr.mxu0 0.0
        %351 = vmatpush1.msra.mxu0 0.0
        %352 = vmatprep.subr.mxu0 0.0
        %353 = vmatpush1.msra.mxu0 0.0
        %354 = vmatprep.subr.mxu0 0.0
        %355 = vmatpush1.msra.mxu0 0.0
        %356 = vmatprep.subr.mxu0 0.0
        %357 = vmatpush1.msra.mxu0 0.0
        %358 = vmatprep.subr.mxu0 0.0
        %359 = vmatpush1.msra.mxu0 0.0
        %360 = vmatprep.subr.mxu0 0.0
        %361 = vmatpush1.msra.mxu0 0.0
        %362 = vmatprep.subr.mxu0 0.0
        %363 = vmatpush1.msra.mxu0 0.0
        %364 = vmatprep.subr.mxu0 0.0
        %365 = vmatpush1.msra.mxu0 0.0
        %366 = vmatprep.subr.mxu0 0.0
        %367 = vmatpush1.msra.mxu0 0.0
        %368 = vmatprep.subr.mxu0 0.0
        %369 = vmatpush1.msra.mxu0 0.0
        %370 = vmatprep.subr.mxu0 0.0
        %371 = vmatpush1.msra.mxu0 0.0
        %372 = vmatprep.subr.mxu0 0.0
        %373 = vmatpush1.msra.mxu0 0.0
        %374 = vmatprep.subr.mxu0 0.0
        %375 = vmatpush1.msra.mxu0 0.0
        %376 = vmatprep.subr.mxu0 0.0
        %377 = vmatpush1.msra.mxu0 0.0
        %378 = vmatprep.subr.mxu0 0.0
        %379 = vmatpush1.msra.mxu0 0.0
        %380 = vmatprep.subr.mxu0 0.0
        %381 = vmatpush1.msra.mxu0 0.0
        %382 = vmatprep.subr.mxu0 0.0
        %383 = vmatpush1.msra.mxu0 0.0
        %384 = vmatprep.subr.mxu0 0.0
        %385 = vmatpush1.msra.mxu0 0.0
        %386 = vmatprep.subr.mxu0 0.0
        %387 = vmatpush1.msra.mxu0 0.0
        %388 = vmatprep.subr.mxu0 0.0
        %389 = vmatpush1.msra.mxu0 0.0
        %390 = vmatprep.subr.mxu0 0.0
        %391 = vmatpush1.msra.mxu0 0.0
        %392 = vmatprep.subr.mxu0 0.0
        %393 = vmatpush1.msra.mxu0 0.0
        %394 = vmatprep.subr.mxu0 0.0
        %395 = vmatpush1.msra.mxu0 0.0
        %396 = vmatprep.subr.mxu0 0.0
        %397 = vmatpush1.msra.mxu0 0.0
        %398 = vmatprep.subr.mxu0 0.0
        %399 = vmatpush1.msra.mxu0 0.0
        %400 = vmatprep.subr.mxu0 0.0
        %401 = vmatpush1.msra.mxu0 0.0
        %402 = vmatprep.subr.mxu0 0.0
        %403 = vmatpush1.msra.mxu0 0.0
        %404 = vmatprep.subr.mxu0 0.0
        %405 = vmatpush1.msra.mxu0 0.0
        %406 = vmatprep.mubr.f32.mxu0 0.0
        %407 = vmatmul.mubr.f32.gmra.mrb[0].mxu0 %v340
        %v408 = vpop.f32.mrb[0].mxu0
        %v409 = vadd.f32 %v336, %v408
        %v410 = vpop.f32.mrb[0].mxu0
        %411 = vdwg.mxu0
        %v412 = vld [vmem:[%s276] sm:$0xff]
        %s413 = scalar_lea.vmem [#allocation8], 32
        %v414 = vld [vmem:[%s413] sm:$0xff]
        %v415 = vld [vmem:[%s413 + $0x8] sm:$0xff]
        %v416 = vld [vmem:[%s413 + $0x10] sm:$0xff]
        %v417 = vld [vmem:[%s413 + $0x18] sm:$0xff]
        %s418 = scalar_lea.vmem %s4, 1
        %v419 = vld [vmem:[%s418] sm:$0x1]
        %v421 = vlaneseq
        %v422 = vshrl.u32 %v421, 7
        %v423 = vsub.s32 0, %v422
        %v424 = vrot.slane %v419, %v423
        %v427 = vsel %vm338, %v412, 0
        %429 = vmatprep.subr.mxu0 0.0
        %430 = vmatpush1.msra.mxu0 %v414
        %431 = vmatprep.subr.mxu0 0.0
        %432 = vmatpush1.msra.mxu0 %v415
        %433 = vmatprep.subr.mxu0 0.0
        %434 = vmatpush1.msra.mxu0 %v416
        %435 = vmatprep.subr.mxu0 0.0
        %436 = vmatpush1.msra.mxu0 %v417
        %437 = vmatprep.subr.mxu0 0.0
        %438 = vmatpush1.msra.mxu0 0.0
        %439 = vmatprep.subr.mxu0 0.0
        %440 = vmatpush1.msra.mxu0 0.0
        %441 = vmatprep.subr.mxu0 0.0
        %442 = vmatpush1.msra.mxu0 0.0
        %443 = vmatprep.subr.mxu0 0.0
        %444 = vmatpush1.msra.mxu0 0.0
        %445 = vmatprep.subr.mxu0 0.0
        %446 = vmatpush1.msra.mxu0 0.0
        %447 = vmatprep.subr.mxu0 0.0
        %448 = vmatpush1.msra.mxu0 0.0
        %449 = vmatprep.subr.mxu0 0.0
        %450 = vmatpush1.msra.mxu0 0.0
        %451 = vmatprep.subr.mxu0 0.0
        %452 = vmatpush1.msra.mxu0 0.0
        %453 = vmatprep.subr.mxu0 0.0
        %454 = vmatpush1.msra.mxu0 0.0
        %455 = vmatprep.subr.mxu0 0.0
        %456 = vmatpush1.msra.mxu0 0.0
        %457 = vmatprep.subr.mxu0 0.0
        %458 = vmatpush1.msra.mxu0 0.0
        %459 = vmatprep.subr.mxu0 0.0
        %460 = vmatpush1.msra.mxu0 0.0
        %461 = vmatprep.subr.mxu0 0.0
        %462 = vmatpush1.msra.mxu0 0.0
        %463 = vmatprep.subr.mxu0 0.0
        %464 = vmatpush1.msra.mxu0 0.0
        %465 = vmatprep.subr.mxu0 0.0
        %466 = vmatpush1.msra.mxu0 0.0
        %467 = vmatprep.subr.mxu0 0.0
        %468 = vmatpush1.msra.mxu0 0.0
        %469 = vmatprep.subr.mxu0 0.0
        %470 = vmatpush1.msra.mxu0 0.0
        %471 = vmatprep.subr.mxu0 0.0
        %472 = vmatpush1.msra.mxu0 0.0
        %473 = vmatprep.subr.mxu0 0.0
        %474 = vmatpush1.msra.mxu0 0.0
        %475 = vmatprep.subr.mxu0 0.0
        %476 = vmatpush1.msra.mxu0 0.0
        %477 = vmatprep.subr.mxu0 0.0
        %478 = vmatpush1.msra.mxu0 0.0
        %479 = vmatprep.subr.mxu0 0.0
        %480 = vmatpush1.msra.mxu0 0.0
        %481 = vmatprep.subr.mxu0 0.0
        %482 = vmatpush1.msra.mxu0 0.0
        %483 = vmatprep.subr.mxu0 0.0
        %484 = vmatpush1.msra.mxu0 0.0
        %485 = vmatprep.subr.mxu0 0.0
        %486 = vmatpush1.msra.mxu0 0.0
        %487 = vmatprep.subr.mxu0 0.0
        %488 = vmatpush1.msra.mxu0 0.0
        %489 = vmatprep.subr.mxu0 0.0
        %490 = vmatpush1.msra.mxu0 0.0
        %491 = vmatprep.subr.mxu0 0.0
        %492 = vmatpush1.msra.mxu0 0.0
        %493 = vmatprep.mubr.f32.mxu0 0.0
        %494 = vmatmul.mubr.f32.gmra.mrb[0].mxu0 %v427
        %v495 = vpop.f32.mrb[0].mxu0
        %v496 = vadd.f32 %v424, %v495
        %v497 = vpop.f32.mrb[0].mxu0
        %498 = vdwg.mxu0
        %v499 = vld [vmem:[%s285] sm:$0xff]
        %s500 = scalar_lea.vmem [#allocation8], 64
        %v501 = vld [vmem:[%s500] sm:$0xff]
        %v502 = vld [vmem:[%s500 + $0x8] sm:$0xff]
        %v503 = vld [vmem:[%s500 + $0x10] sm:$0xff]
        %v504 = vld [vmem:[%s500 + $0x18] sm:$0xff]
        %s505 = scalar_lea.vmem %s4, 2
        %v506 = vld [vmem:[%s505] sm:$0x1]
        %v508 = vlaneseq
        %v509 = vshrl.u32 %v508, 7
        %v510 = vsub.s32 0, %v509
        %v511 = vrot.slane %v506, %v510
        %v514 = vsel %vm338, %v499, 0
        %516 = vmatprep.subr.mxu0 0.0
        %517 = vmatpush1.msra.mxu0 %v501
        %518 = vmatprep.subr.mxu0 0.0
        %519 = vmatpush1.msra.mxu0 %v502
        %520 = vmatprep.subr.mxu0 0.0
        %521 = vmatpush1.msra.mxu0 %v503
        %522 = vmatprep.subr.mxu0 0.0
        %523 = vmatpush1.msra.mxu0 %v504
        %524 = vmatprep.subr.mxu0 0.0
        %525 = vmatpush1.msra.mxu0 0.0
        %526 = vmatprep.subr.mxu0 0.0
        %527 = vmatpush1.msra.mxu0 0.0
        %528 = vmatprep.subr.mxu0 0.0
        %529 = vmatpush1.msra.mxu0 0.0
        %530 = vmatprep.subr.mxu0 0.0
        %531 = vmatpush1.msra.mxu0 0.0
        %532 = vmatprep.subr.mxu0 0.0
        %533 = vmatpush1.msra.mxu0 0.0
        %534 = vmatprep.subr.mxu0 0.0
        %535 = vmatpush1.msra.mxu0 0.0
        %536 = vmatprep.subr.mxu0 0.0
        %537 = vmatpush1.msra.mxu0 0.0
        %538 = vmatprep.subr.mxu0 0.0
        %539 = vmatpush1.msra.mxu0 0.0
        %540 = vmatprep.subr.mxu0 0.0
        %541 = vmatpush1.msra.mxu0 0.0
        %542 = vmatprep.subr.mxu0 0.0
        %543 = vmatpush1.msra.mxu0 0.0
        %544 = vmatprep.subr.mxu0 0.0
        %545 = vmatpush1.msra.mxu0 0.0
        %546 = vmatprep.subr.mxu0 0.0
        %547 = vmatpush1.msra.mxu0 0.0
        %548 = vmatprep.subr.mxu0 0.0
        %549 = vmatpush1.msra.mxu0 0.0
        %550 = vmatprep.subr.mxu0 0.0
        %551 = vmatpush1.msra.mxu0 0.0
        %552 = vmatprep.subr.mxu0 0.0
        %553 = vmatpush1.msra.mxu0 0.0
        %554 = vmatprep.subr.mxu0 0.0
        %555 = vmatpush1.msra.mxu0 0.0
        %556 = vmatprep.subr.mxu0 0.0
        %557 = vmatpush1.msra.mxu0 0.0
        %558 = vmatprep.subr.mxu0 0.0
        %559 = vmatpush1.msra.mxu0 0.0
        %560 = vmatprep.subr.mxu0 0.0
        %561 = vmatpush1.msra.mxu0 0.0
        %562 = vmatprep.subr.mxu0 0.0
        %563 = vmatpush1.msra.mxu0 0.0
        %564 = vmatprep.subr.mxu0 0.0
        %565 = vmatpush1.msra.mxu0 0.0
        %566 = vmatprep.subr.mxu0 0.0
        %567 = vmatpush1.msra.mxu0 0.0
        %568 = vmatprep.subr.mxu0 0.0
        %569 = vmatpush1.msra.mxu0 0.0
        %570 = vmatprep.subr.mxu0 0.0
        %571 = vmatpush1.msra.mxu0 0.0
        %572 = vmatprep.subr.mxu0 0.0
        %573 = vmatpush1.msra.mxu0 0.0
        %574 = vmatprep.subr.mxu0 0.0
        %575 = vmatpush1.msra.mxu0 0.0
        %576 = vmatprep.subr.mxu0 0.0
        %577 = vmatpush1.msra.mxu0 0.0
        %578 = vmatprep.subr.mxu0 0.0
        %579 = vmatpush1.msra.mxu0 0.0
        %580 = vmatprep.mubr.f32.mxu0 0.0
        %581 = vmatmul.mubr.f32.gmra.mrb[0].mxu0 %v514
        %v582 = vpop.f32.mrb[0].mxu0
        %v583 = vadd.f32 %v511, %v582
        %v584 = vpop.f32.mrb[0].mxu0
        %585 = vdwg.mxu0
        %s586 = scalar_lea.vmem [#allocation8], 96
        %v587 = vld [vmem:[%s586] sm:$0xff]
        %v588 = vld [vmem:[%s586 + $0x8] sm:$0xff]
        %v589 = vld [vmem:[%s586 + $0x10] sm:$0xff]
        %v590 = vld [vmem:[%s586 + $0x18] sm:$0xff]
        %vm591 = vcmask 64512
        %v593 = vsel %vm591, %v409, 0
        %v596 = vsel %vm591, %v496, 0
        %598 = vmatprep.subr.mxu0 0.0
        %599 = vmatpush1.xpose.msra.mxu0 %v596
        %600 = vmatprep.subr.mxu0 0.0
        %601 = vmatpush1.xpose.msra.mxu0 0.0
        %602 = vmatprep.subr.mxu0 0.0
        %603 = vmatpush1.xpose.msra.mxu0 0.0
        %604 = vmatprep.subr.mxu0 0.0
        %605 = vmatpush1.xpose.msra.mxu0 0.0
        %606 = vmatprep.subr.mxu0 0.0
        %607 = vmatpush1.xpose.msra.mxu0 0.0
        %608 = vmatprep.subr.mxu0 0.0
        %609 = vmatpush1.xpose.msra.mxu0 0.0
        %610 = vmatprep.subr.mxu0 0.0
        %611 = vmatpush1.xpose.msra.mxu0 0.0
        %612 = vmatprep.subr.mxu0 0.0
        %613 = vmatpush1.xpose.msra.mxu0 0.0
        %614 = vmatprep.subr.mxu0 0.0
        %615 = vmatpush1.xpose.msra.mxu0 0.0
        %616 = vmatprep.subr.mxu0 0.0
        %617 = vmatpush1.xpose.msra.mxu0 0.0
        %618 = vmatprep.subr.mxu0 0.0
        %619 = vmatpush1.xpose.msra.mxu0 0.0
        %620 = vmatprep.subr.mxu0 0.0
        %621 = vmatpush1.xpose.msra.mxu0 0.0
        %622 = vmatprep.subr.mxu0 0.0
        %623 = vmatpush1.xpose.msra.mxu0 0.0
        %624 = vmatprep.subr.mxu0 0.0
        %625 = vmatpush1.xpose.msra.mxu0 0.0
        %626 = vmatprep.subr.mxu0 0.0
        %627 = vmatpush1.xpose.msra.mxu0 0.0
        %628 = vmatprep.subr.mxu0 0.0
        %629 = vmatpush1.xpose.msra.mxu0 0.0
        %630 = vmatprep.subr.mxu0 0.0
        %631 = vmatpush1.xpose.msra.mxu0 0.0
        %632 = vmatprep.subr.mxu0 0.0
        %633 = vmatpush1.xpose.msra.mxu0 0.0
        %634 = vmatprep.subr.mxu0 0.0
        %635 = vmatpush1.xpose.msra.mxu0 0.0
        %636 = vmatprep.subr.mxu0 0.0
        %637 = vmatpush1.xpose.msra.mxu0 0.0
        %638 = vmatprep.subr.mxu0 0.0
        %639 = vmatpush1.xpose.msra.mxu0 0.0
        %640 = vmatprep.subr.mxu0 0.0
        %641 = vmatpush1.xpose.msra.mxu0 0.0
        %642 = vmatprep.subr.mxu0 0.0
        %643 = vmatpush1.xpose.msra.mxu0 0.0
        %644 = vmatprep.subr.mxu0 0.0
        %645 = vmatpush1.xpose.msra.mxu0 0.0
        %646 = vmatprep.subr.mxu0 0.0
        %647 = vmatpush1.xpose.msra.mxu0 0.0
        %648 = vmatprep.subr.mxu0 0.0
        %649 = vmatpush1.xpose.msra.mxu0 0.0
        %650 = vmatprep.subr.mxu0 0.0
        %651 = vmatpush1.xpose.msra.mxu0 0.0
        %652 = vmatprep.subr.mxu0 0.0
        %653 = vmatpush1.xpose.msra.mxu0 0.0
        %654 = vmatprep.subr.mxu0 0.0
        %655 = vmatpush1.xpose.msra.mxu0 0.0
        %656 = vmatprep.subr.mxu0 0.0
        %657 = vmatpush1.xpose.msra.mxu0 0.0
        %658 = vmatprep.subr.mxu0 0.0
        %659 = vmatpush1.xpose.msra.mxu0 0.0
        %660 = vmatprep.subr.mxu0 0.0
        %661 = vmatpush1.xpose.msra.mxu0 0.0
        %662 = vmatprep.mubr.f32.mxu0 0.0
        %663 = vmatmul.mubr.f32.gmra.mrb[0].mxu0 %v593
        %v664 = vpop.f32.mrb[0].mxu0
        %v665 = vadd.f32 0.0, %v664
        %v666 = vpop.f32.mrb[0].mxu0
        %667 = vdwg.mxu0
        %v668 = vmul.f32 %v665, 0.17677669
        %v669 = vsel %vm591, %v668, -inf
        %670 = vmax.xlane.f32.xlu0 %v669
        %v671 = vpop.xlane.xlu0 %670
        %v672 = vsub.f32 %v668, %v671
        %v673 = vmul.f32 %v672, 1.442695
        %v674 = vpow.pop %v673
        %v675 = vsel %vm591, %v674, 0.0
        %676 = vadd.xlane.f32.xlu0 %v675
        %v677 = vpop.xlane.xlu0 %676
        %v678 = vrcp.pop %v677
        %v679 = vmul.f32 %v674, %v678
        %v680 = vxor.u32 %v679, 2147483648
        %v681 = vmul.f32 %v680, 1.442695
        %v682 = vpow.pop %v681
        %v683 = vadd.f32 %v682, 1.0
        %v684 = vrcp.pop %v683
        %v685 = vmul.f32 1.0, %v684
        %v687 = vsel %vm591, %v685, 0
        %689 = vmatprep.subr.mxu0 0.0
        %690 = vmatpush1.msra.mxu0 %v583
        %691 = vmatprep.subr.mxu0 0.0
        %692 = vmatpush1.msra.mxu0 0.0
        %693 = vmatprep.subr.mxu0 0.0
        %694 = vmatpush1.msra.mxu0 0.0
        %695 = vmatprep.subr.mxu0 0.0
        %696 = vmatpush1.msra.mxu0 0.0
        %697 = vmatprep.subr.mxu0 0.0
        %698 = vmatpush1.msra.mxu0 0.0
        %699 = vmatprep.subr.mxu0 0.0
        %700 = vmatpush1.msra.mxu0 0.0
        %701 = vmatprep.subr.mxu0 0.0
        %702 = vmatpush1.msra.mxu0 0.0
        %703 = vmatprep.subr.mxu0 0.0
        %704 = vmatpush1.msra.mxu0 0.0
        %705 = vmatprep.subr.mxu0 0.0
        %706 = vmatpush1.msra.mxu0 0.0
        %707 = vmatprep.subr.mxu0 0.0
        %708 = vmatpush1.msra.mxu0 0.0
        %709 = vmatprep.subr.mxu0 0.0
        %710 = vmatpush1.msra.mxu0 0.0
        %711 = vmatprep.subr.mxu0 0.0
        %712 = vmatpush1.msra.mxu0 0.0
        %713 = vmatprep.subr.mxu0 0.0
        %714 = vmatpush1.msra.mxu0 0.0
        %715 = vmatprep.subr.mxu0 0.0
        %716 = vmatpush1.msra.mxu0 0.0
        %717 = vmatprep.subr.mxu0 0.0
        %718 = vmatpush1.msra.mxu0 0.0
        %719 = vmatprep.subr.mxu0 0.0
        %720 = vmatpush1.msra.mxu0 0.0
        %721 = vmatprep.subr.mxu0 0.0
        %722 = vmatpush1.msra.mxu0 0.0
        %723 = vmatprep.subr.mxu0 0.0
        %724 = vmatpush1.msra.mxu0 0.0
        %725 = vmatprep.subr.mxu0 0.0
        %726 = vmatpush1.msra.mxu0 0.0
        %727 = vmatprep.subr.mxu0 0.0
        %728 = vmatpush1.msra.mxu0 0.0
        %729 = vmatprep.subr.mxu0 0.0
        %730 = vmatpush1.msra.mxu0 0.0
        %731 = vmatprep.subr.mxu0 0.0
        %732 = vmatpush1.msra.mxu0 0.0
        %733 = vmatprep.subr.mxu0 0.0
        %734 = vmatpush1.msra.mxu0 0.0
        %735 = vmatprep.subr.mxu0 0.0
        %736 = vmatpush1.msra.mxu0 0.0
        %737 = vmatprep.subr.mxu0 0.0
        %738 = vmatpush1.msra.mxu0 0.0
        %739 = vmatprep.subr.mxu0 0.0
        %740 = vmatpush1.msra.mxu0 0.0
        %741 = vmatprep.subr.mxu0 0.0
        %742 = vmatpush1.msra.mxu0 0.0
        %743 = vmatprep.subr.mxu0 0.0
        %744 = vmatpush1.msra.mxu0 0.0
        %745 = vmatprep.subr.mxu0 0.0
        %746 = vmatpush1.msra.mxu0 0.0
        %747 = vmatprep.subr.mxu0 0.0
        %748 = vmatpush1.msra.mxu0 0.0
        %749 = vmatprep.subr.mxu0 0.0
        %750 = vmatpush1.msra.mxu0 0.0
        %751 = vmatprep.subr.mxu0 0.0
        %752 = vmatpush1.msra.mxu0 0.0
        %753 = vmatprep.mubr.f32.mxu0 0.0
        %754 = vmatmul.mubr.f32.gmra.mrb[0].mxu0 %v687
        %v755 = vpop.f32.mrb[0].mxu0
        %v756 = vadd.f32 0.0, %v755
        %v757 = vpop.f32.mrb[0].mxu0
        %758 = vdwg.mxu0
        %759 = vrot.lane.b32.xlu0 %v409, 120
        %v760 = vpop.permute.xlu0 %759
        %761 = vrot.lane.b32.xlu0 %v496, 120
        %v762 = vpop.permute.xlu0 %761
        %v763 = vsel %vm591, %v760, 0
        %v765 = vsel %vm591, %v762, 0
        %767 = vmatprep.subr.mxu0 0.0
        %768 = vmatpush1.xpose.msra.mxu0 %v765
        %769 = vmatprep.subr.mxu0 0.0
        %770 = vmatpush1.xpose.msra.mxu0 0.0
        %771 = vmatprep.subr.mxu0 0.0
        %772 = vmatpush1.xpose.msra.mxu0 0.0
        %773 = vmatprep.subr.mxu0 0.0
        %774 = vmatpush1.xpose.msra.mxu0 0.0
        %775 = vmatprep.subr.mxu0 0.0
        %776 = vmatpush1.xpose.msra.mxu0 0.0
        %777 = vmatprep.subr.mxu0 0.0
        %778 = vmatpush1.xpose.msra.mxu0 0.0
        %779 = vmatprep.subr.mxu0 0.0
        %780 = vmatpush1.xpose.msra.mxu0 0.0
        %781 = vmatprep.subr.mxu0 0.0
        %782 = vmatpush1.xpose.msra.mxu0 0.0
        %783 = vmatprep.subr.mxu0 0.0
        %784 = vmatpush1.xpose.msra.mxu0 0.0
        %785 = vmatprep.subr.mxu0 0.0
        %786 = vmatpush1.xpose.msra.mxu0 0.0
        %787 = vmatprep.subr.mxu0 0.0
        %788 = vmatpush1.xpose.msra.mxu0 0.0
        %789 = vmatprep.subr.mxu0 0.0
        %790 = vmatpush1.xpose.msra.mxu0 0.0
        %791 = vmatprep.subr.mxu0 0.0
        %792 = vmatpush1.xpose.msra.mxu0 0.0
        %793 = vmatprep.subr.mxu0 0.0
        %794 = vmatpush1.xpose.msra.mxu0 0.0
        %795 = vmatprep.subr.mxu0 0.0
        %796 = vmatpush1.xpose.msra.mxu0 0.0
        %797 = vmatprep.subr.mxu0 0.0
        %798 = vmatpush1.xpose.msra.mxu0 0.0
        %799 = vmatprep.subr.mxu0 0.0
        %800 = vmatpush1.xpose.msra.mxu0 0.0
        %801 = vmatprep.subr.mxu0 0.0
        %802 = vmatpush1.xpose.msra.mxu0 0.0
        %803 = vmatprep.subr.mxu0 0.0
        %804 = vmatpush1.xpose.msra.mxu0 0.0
        %805 = vmatprep.subr.mxu0 0.0
        %806 = vmatpush1.xpose.msra.mxu0 0.0
        %807 = vmatprep.subr.mxu0 0.0
        %808 = vmatpush1.xpose.msra.mxu0 0.0
        %809 = vmatprep.subr.mxu0 0.0
        %810 = vmatpush1.xpose.msra.mxu0 0.0
        %811 = vmatprep.subr.mxu0 0.0
        %812 = vmatpush1.xpose.msra.mxu0 0.0
        %813 = vmatprep.subr.mxu0 0.0
        %814 = vmatpush1.xpose.msra.mxu0 0.0
        %815 = vmatprep.subr.mxu0 0.0
        %816 = vmatpush1.xpose.msra.mxu0 0.0
        %817 = vmatprep.subr.mxu0 0.0
        %818 = vmatpush1.xpose.msra.mxu0 0.0
        %819 = vmatprep.subr.mxu0 0.0
        %820 = vmatpush1.xpose.msra.mxu0 0.0
        %821 = vmatprep.subr.mxu0 0.0
        %822 = vmatpush1.xpose.msra.mxu0 0.0
        %823 = vmatprep.subr.mxu0 0.0
        %824 = vmatpush1.xpose.msra.mxu0 0.0
        %825 = vmatprep.subr.mxu0 0.0
        %826 = vmatpush1.xpose.msra.mxu0 0.0
        %827 = vmatprep.subr.mxu0 0.0
        %828 = vmatpush1.xpose.msra.mxu0 0.0
        %829 = vmatprep.subr.mxu0 0.0
        %830 = vmatpush1.xpose.msra.mxu0 0.0
        %831 = vmatprep.mubr.f32.mxu0 0.0
        %832 = vmatmul.mubr.f32.gmra.mrb[0].mxu0 %v763
        %v833 = vpop.f32.mrb[0].mxu0
        %v834 = vadd.f32 0.0, %v833
        %v835 = vpop.f32.mrb[0].mxu0
        %836 = vdwg.mxu0
        %v837 = vmul.f32 %v834, 0.17677669
        %v838 = vsel %vm591, %v837, -inf
        %839 = vmax.xlane.f32.xlu0 %v838
        %v840 = vpop.xlane.xlu0 %839
        %v841 = vsub.f32 %v837, %v840
        %v842 = vmul.f32 %v841, 1.442695
        %v843 = vpow.pop %v842
        %v844 = vsel %vm591, %v843, 0.0
        %845 = vadd.xlane.f32.xlu0 %v844
        %v846 = vpop.xlane.xlu0 %845
        %v847 = vrcp.pop %v846
        %v848 = vmul.f32 %v843, %v847
        %v849 = vxor.u32 %v848, 2147483648
        %v850 = vmul.f32 %v849, 1.442695
        %v851 = vpow.pop %v850
        %v852 = vadd.f32 %v851, 1.0
        %v853 = vrcp.pop %v852
        %v854 = vmul.f32 1.0, %v853
        %856 = vrot.lane.b32.xlu0 %v583, 120
        %v857 = vpop.permute.xlu0 %856
        %v860 = vsel %vm591, %v854, 0
        %862 = vmatprep.subr.mxu0 0.0
        %863 = vmatpush1.msra.mxu0 %v857
        %864 = vmatprep.subr.mxu0 0.0
        %865 = vmatpush1.msra.mxu0 0.0
        %866 = vmatprep.subr.mxu0 0.0
        %867 = vmatpush1.msra.mxu0 0.0
        %868 = vmatprep.subr.mxu0 0.0
        %869 = vmatpush1.msra.mxu0 0.0
        %870 = vmatprep.subr.mxu0 0.0
        %871 = vmatpush1.msra.mxu0 0.0
        %872 = vmatprep.subr.mxu0 0.0
        %873 = vmatpush1.msra.mxu0 0.0
        %874 = vmatprep.subr.mxu0 0.0
        %875 = vmatpush1.msra.mxu0 0.0
        %876 = vmatprep.subr.mxu0 0.0
        %877 = vmatpush1.msra.mxu0 0.0
        %878 = vmatprep.subr.mxu0 0.0
        %879 = vmatpush1.msra.mxu0 0.0
        %880 = vmatprep.subr.mxu0 0.0
        %881 = vmatpush1.msra.mxu0 0.0
        %882 = vmatprep.subr.mxu0 0.0
        %883 = vmatpush1.msra.mxu0 0.0
        %884 = vmatprep.subr.mxu0 0.0
        %885 = vmatpush1.msra.mxu0 0.0
        %886 = vmatprep.subr.mxu0 0.0
        %887 = vmatpush1.msra.mxu0 0.0
        %888 = vmatprep.subr.mxu0 0.0
        %889 = vmatpush1.msra.mxu0 0.0
        %890 = vmatprep.subr.mxu0 0.0
        %891 = vmatpush1.msra.mxu0 0.0
        %892 = vmatprep.subr.mxu0 0.0
        %893 = vmatpush1.msra.mxu0 0.0
        %894 = vmatprep.subr.mxu0 0.0
        %895 = vmatpush1.msra.mxu0 0.0
        %896 = vmatprep.subr.mxu0 0.0
        %897 = vmatpush1.msra.mxu0 0.0
        %898 = vmatprep.subr.mxu0 0.0
        %899 = vmatpush1.msra.mxu0 0.0
        %900 = vmatprep.subr.mxu0 0.0
        %901 = vmatpush1.msra.mxu0 0.0
        %902 = vmatprep.subr.mxu0 0.0
        %903 = vmatpush1.msra.mxu0 0.0
        %904 = vmatprep.subr.mxu0 0.0
        %905 = vmatpush1.msra.mxu0 0.0
        %906 = vmatprep.subr.mxu0 0.0
        %907 = vmatpush1.msra.mxu0 0.0
        %908 = vmatprep.subr.mxu0 0.0
        %909 = vmatpush1.msra.mxu0 0.0
        %910 = vmatprep.subr.mxu0 0.0
        %911 = vmatpush1.msra.mxu0 0.0
        %912 = vmatprep.subr.mxu0 0.0
        %913 = vmatpush1.msra.mxu0 0.0
        %914 = vmatprep.subr.mxu0 0.0
        %915 = vmatpush1.msra.mxu0 0.0
        %916 = vmatprep.subr.mxu0 0.0
        %917 = vmatpush1.msra.mxu0 0.0
        %918 = vmatprep.subr.mxu0 0.0
        %919 = vmatpush1.msra.mxu0 0.0
        %920 = vmatprep.subr.mxu0 0.0
        %921 = vmatpush1.msra.mxu0 0.0
        %922 = vmatprep.subr.mxu0 0.0
        %923 = vmatpush1.msra.mxu0 0.0
        %924 = vmatprep.subr.mxu0 0.0
        %925 = vmatpush1.msra.mxu0 0.0
        %926 = vmatprep.mubr.f32.mxu0 0.0
        %927 = vmatmul.mubr.f32.gmra.mrb[0].mxu0 %v860
        %v928 = vpop.f32.mrb[0].mxu0
        %v929 = vadd.f32 0.0, %v928
        %v930 = vpop.f32.mrb[0].mxu0
        %931 = vdwg.mxu0
        %v933 = vsel %vm591, %v929, 0
        %935 = vmatprep.subr.mxu0 0.0
        %936 = vmatpush1.msra.mxu0 %v588
        %937 = vmatprep.subr.mxu0 0.0
        %938 = vmatpush1.msra.mxu0 0.0
        %939 = vmatprep.subr.mxu0 0.0
        %940 = vmatpush1.msra.mxu0 0.0
        %941 = vmatprep.subr.mxu0 0.0
        %942 = vmatpush1.msra.mxu0 0.0
        %943 = vmatprep.subr.mxu0 0.0
        %944 = vmatpush1.msra.mxu0 0.0
        %945 = vmatprep.subr.mxu0 0.0
        %946 = vmatpush1.msra.mxu0 0.0
        %947 = vmatprep.subr.mxu0 0.0
        %948 = vmatpush1.msra.mxu0 0.0
        %949 = vmatprep.subr.mxu0 0.0
        %950 = vmatpush1.msra.mxu0 0.0
        %951 = vmatprep.subr.mxu0 0.0
        %952 = vmatpush1.msra.mxu0 0.0
        %953 = vmatprep.subr.mxu0 0.0
        %954 = vmatpush1.msra.mxu0 0.0
        %955 = vmatprep.subr.mxu0 0.0
        %956 = vmatpush1.msra.mxu0 0.0
        %957 = vmatprep.subr.mxu0 0.0
        %958 = vmatpush1.msra.mxu0 0.0
        %959 = vmatprep.subr.mxu0 0.0
        %960 = vmatpush1.msra.mxu0 0.0
        %961 = vmatprep.subr.mxu0 0.0
        %962 = vmatpush1.msra.mxu0 0.0
        %963 = vmatprep.subr.mxu0 0.0
        %964 = vmatpush1.msra.mxu0 0.0
        %965 = vmatprep.subr.mxu0 0.0
        %966 = vmatpush1.msra.mxu0 0.0
        %967 = vmatprep.subr.mxu0 0.0
        %968 = vmatpush1.msra.mxu0 0.0
        %969 = vmatprep.subr.mxu0 0.0
        %970 = vmatpush1.msra.mxu0 0.0
        %971 = vmatprep.subr.mxu0 0.0
        %972 = vmatpush1.msra.mxu0 0.0
        %973 = vmatprep.subr.mxu0 0.0
        %974 = vmatpush1.msra.mxu0 0.0
        %975 = vmatprep.subr.mxu0 0.0
        %976 = vmatpush1.msra.mxu0 0.0
        %977 = vmatprep.subr.mxu0 0.0
        %978 = vmatpush1.msra.mxu0 0.0
        %979 = vmatprep.subr.mxu0 0.0
        %980 = vmatpush1.msra.mxu0 0.0
        %981 = vmatprep.subr.mxu0 0.0
        %982 = vmatpush1.msra.mxu0 0.0
        %983 = vmatprep.subr.mxu0 0.0
        %984 = vmatpush1.msra.mxu0 0.0
        %985 = vmatprep.subr.mxu0 0.0
        %986 = vmatpush1.msra.mxu0 0.0
        %987 = vmatprep.subr.mxu0 0.0
        %988 = vmatpush1.msra.mxu0 0.0
        %989 = vmatprep.subr.mxu0 0.0
        %990 = vmatpush1.msra.mxu0 0.0
        %991 = vmatprep.subr.mxu0 0.0
        %992 = vmatpush1.msra.mxu0 0.0
        %993 = vmatprep.subr.mxu0 0.0
        %994 = vmatpush1.msra.mxu0 0.0
        %995 = vmatprep.subr.mxu0 0.0
        %996 = vmatpush1.msra.mxu0 0.0
        %997 = vmatprep.subr.mxu0 0.0
        %998 = vmatpush1.msra.mxu0 0.0
        %999 = vmatprep.mubr.f32.mxu0 0.0
        %1000 = vmatmul.mubr.f32.gmra.mrb[0].mxu0 %v933
        %v1001 = vpop.f32.mrb[0].mxu0
        %v1002 = vadd.f32 0.0, %v1001
        %v1003 = vpop.f32.mrb[0].mxu0
        %1004 = vdwg.mxu0
        %v1006 = vsel %vm591, %v756, 0
        %1008 = vmatprep.subr.mxu0 0.0
        %1009 = vmatpush1.msra.mxu0 %v587
        %1010 = vmatprep.subr.mxu0 0.0
        %1011 = vmatpush1.msra.mxu0 0.0
        %1012 = vmatprep.subr.mxu0 0.0
        %1013 = vmatpush1.msra.mxu0 0.0
        %1014 = vmatprep.subr.mxu0 0.0
        %1015 = vmatpush1.msra.mxu0 0.0
        %1016 = vmatprep.subr.mxu0 0.0
        %1017 = vmatpush1.msra.mxu0 0.0
        %1018 = vmatprep.subr.mxu0 0.0
        %1019 = vmatpush1.msra.mxu0 0.0
        %1020 = vmatprep.subr.mxu0 0.0
        %1021 = vmatpush1.msra.mxu0 0.0
        %1022 = vmatprep.subr.mxu0 0.0
        %1023 = vmatpush1.msra.mxu0 0.0
        %1024 = vmatprep.subr.mxu0 0.0
        %1025 = vmatpush1.msra.mxu0 0.0
        %1026 = vmatprep.subr.mxu0 0.0
        %1027 = vmatpush1.msra.mxu0 0.0
        %1028 = vmatprep.subr.mxu0 0.0
        %1029 = vmatpush1.msra.mxu0 0.0
        %1030 = vmatprep.subr.mxu0 0.0
        %1031 = vmatpush1.msra.mxu0 0.0
        %1032 = vmatprep.subr.mxu0 0.0
        %1033 = vmatpush1.msra.mxu0 0.0
        %1034 = vmatprep.subr.mxu0 0.0
        %1035 = vmatpush1.msra.mxu0 0.0
        %1036 = vmatprep.subr.mxu0 0.0
        %1037 = vmatpush1.msra.mxu0 0.0
        %1038 = vmatprep.subr.mxu0 0.0
        %1039 = vmatpush1.msra.mxu0 0.0
        %1040 = vmatprep.subr.mxu0 0.0
        %1041 = vmatpush1.msra.mxu0 0.0
        %1042 = vmatprep.subr.mxu0 0.0
        %1043 = vmatpush1.msra.mxu0 0.0
        %1044 = vmatprep.subr.mxu0 0.0
        %1045 = vmatpush1.msra.mxu0 0.0
        %1046 = vmatprep.subr.mxu0 0.0
        %1047 = vmatpush1.msra.mxu0 0.0
        %1048 = vmatprep.subr.mxu0 0.0
        %1049 = vmatpush1.msra.mxu0 0.0
        %1050 = vmatprep.subr.mxu0 0.0
        %1051 = vmatpush1.msra.mxu0 0.0
        %1052 = vmatprep.subr.mxu0 0.0
        %1053 = vmatpush1.msra.mxu0 0.0
        %1054 = vmatprep.subr.mxu0 0.0
        %1055 = vmatpush1.msra.mxu0 0.0
        %1056 = vmatprep.subr.mxu0 0.0
        %1057 = vmatpush1.msra.mxu0 0.0
        %1058 = vmatprep.subr.mxu0 0.0
        %1059 = vmatpush1.msra.mxu0 0.0
        %1060 = vmatprep.subr.mxu0 0.0
        %1061 = vmatpush1.msra.mxu0 0.0
        %1062 = vmatprep.subr.mxu0 0.0
        %1063 = vmatpush1.msra.mxu0 0.0
        %1064 = vmatprep.subr.mxu0 0.0
        %1065 = vmatpush1.msra.mxu0 0.0
        %1066 = vmatprep.subr.mxu0 0.0
        %1067 = vmatpush1.msra.mxu0 0.0
        %1068 = vmatprep.subr.mxu0 0.0
        %1069 = vmatpush1.msra.mxu0 0.0
        %1070 = vmatprep.subr.mxu0 0.0
        %1071 = vmatpush1.msra.mxu0 0.0
        %1072 = vmatprep.mubr.f32.mxu0 0.0
        %1073 = vmatmul.mubr.f32.gmra.mrb[0].mxu0 %v1006
        %v1074 = vpop.f32.mrb[0].mxu0
        %v1075 = vadd.f32 %v1002, %v1074
        %v1076 = vpop.f32.mrb[0].mxu0
        %1077 = vdwg.mxu0
        %1078 = vrot.lane.b32.xlu0 %v409, 112
        %v1079 = vpop.permute.xlu0 %1078
        %1080 = vrot.lane.b32.xlu0 %v496, 112
        %v1081 = vpop.permute.xlu0 %1080
        %v1082 = vsel %vm591, %v1079, 0
        %v1084 = vsel %vm591, %v1081, 0
        %1086 = vmatprep.subr.mxu0 0.0
        %1087 = vmatpush1.xpose.msra.mxu0 %v1084
        %1088 = vmatprep.subr.mxu0 0.0
        %1089 = vmatpush1.xpose.msra.mxu0 0.0
        %1090 = vmatprep.subr.mxu0 0.0
        %1091 = vmatpush1.xpose.msra.mxu0 0.0
        %1092 = vmatprep.subr.mxu0 0.0
        %1093 = vmatpush1.xpose.msra.mxu0 0.0
        %1094 = vmatprep.subr.mxu0 0.0
        %1095 = vmatpush1.xpose.msra.mxu0 0.0
        %1096 = vmatprep.subr.mxu0 0.0
        %1097 = vmatpush1.xpose.msra.mxu0 0.0
        %1098 = vmatprep.subr.mxu0 0.0
        %1099 = vmatpush1.xpose.msra.mxu0 0.0
        %1100 = vmatprep.subr.mxu0 0.0
        %1101 = vmatpush1.xpose.msra.mxu0 0.0
        %1102 = vmatprep.subr.mxu0 0.0
        %1103 = vmatpush1.xpose.msra.mxu0 0.0
        %1104 = vmatprep.subr.mxu0 0.0
        %1105 = vmatpush1.xpose.msra.mxu0 0.0
        %1106 = vmatprep.subr.mxu0 0.0
        %1107 = vmatpush1.xpose.msra.mxu0 0.0
        %1108 = vmatprep.subr.mxu0 0.0
        %1109 = vmatpush1.xpose.msra.mxu0 0.0
        %1110 = vmatprep.subr.mxu0 0.0
        %1111 = vmatpush1.xpose.msra.mxu0 0.0
        %1112 = vmatprep.subr.mxu0 0.0
        %1113 = vmatpush1.xpose.msra.mxu0 0.0
        %1114 = vmatprep.subr.mxu0 0.0
        %1115 = vmatpush1.xpose.msra.mxu0 0.0
        %1116 = vmatprep.subr.mxu0 0.0
        %1117 = vmatpush1.xpose.msra.mxu0 0.0
        %1118 = vmatprep.subr.mxu0 0.0
        %1119 = vmatpush1.xpose.msra.mxu0 0.0
        %1120 = vmatprep.subr.mxu0 0.0
        %1121 = vmatpush1.xpose.msra.mxu0 0.0
        %1122 = vmatprep.subr.mxu0 0.0
        %1123 = vmatpush1.xpose.msra.mxu0 0.0
        %1124 = vmatprep.subr.mxu0 0.0
        %1125 = vmatpush1.xpose.msra.mxu0 0.0
        %1126 = vmatprep.subr.mxu0 0.0
        %1127 = vmatpush1.xpose.msra.mxu0 0.0
        %1128 = vmatprep.subr.mxu0 0.0
        %1129 = vmatpush1.xpose.msra.mxu0 0.0
        %1130 = vmatprep.subr.mxu0 0.0
        %1131 = vmatpush1.xpose.msra.mxu0 0.0
        %1132 = vmatprep.subr.mxu0 0.0
        %1133 = vmatpush1.xpose.msra.mxu0 0.0
        %1134 = vmatprep.subr.mxu0 0.0
        %1135 = vmatpush1.xpose.msra.mxu0 0.0
        %1136 = vmatprep.subr.mxu0 0.0
        %1137 = vmatpush1.xpose.msra.mxu0 0.0
        %1138 = vmatprep.subr.mxu0 0.0
        %1139 = vmatpush1.xpose.msra.mxu0 0.0
        %1140 = vmatprep.subr.mxu0 0.0
        %1141 = vmatpush1.xpose.msra.mxu0 0.0
        %1142 = vmatprep.subr.mxu0 0.0
        %1143 = vmatpush1.xpose.msra.mxu0 0.0
        %1144 = vmatprep.subr.mxu0 0.0
        %1145 = vmatpush1.xpose.msra.mxu0 0.0
        %1146 = vmatprep.subr.mxu0 0.0
        %1147 = vmatpush1.xpose.msra.mxu0 0.0
        %1148 = vmatprep.subr.mxu0 0.0
        %1149 = vmatpush1.xpose.msra.mxu0 0.0
        %1150 = vmatprep.mubr.f32.mxu0 0.0
        %1151 = vmatmul.mubr.f32.gmra.mrb[0].mxu0 %v1082
        %v1152 = vpop.f32.mrb[0].mxu0
        %v1153 = vadd.f32 0.0, %v1152
        %v1154 = vpop.f32.mrb[0].mxu0
        %1155 = vdwg.mxu0
        %v1156 = vmul.f32 %v1153, 0.17677669
        %v1157 = vsel %vm591, %v1156, -inf
        %1158 = vmax.xlane.f32.xlu0 %v1157
        %v1159 = vpop.xlane.xlu0 %1158
        %v1160 = vsub.f32 %v1156, %v1159
        %v1161 = vmul.f32 %v1160, 1.442695
        %v1162 = vpow.pop %v1161
        %v1163 = vsel %vm591, %v1162, 0.0
        %1164 = vadd.xlane.f32.xlu0 %v1163
        %v1165 = vpop.xlane.xlu0 %1164
        %v1166 = vrcp.pop %v1165
        %v1167 = vmul.f32 %v1162, %v1166
        %v1168 = vxor.u32 %v1167, 2147483648
        %v1169 = vmul.f32 %v1168, 1.442695
        %v1170 = vpow.pop %v1169
        %v1171 = vadd.f32 %v1170, 1.0
        %v1172 = vrcp.pop %v1171
        %v1173 = vmul.f32 1.0, %v1172
        %1174 = vrot.lane.b32.xlu0 %v583, 112
        %v1175 = vpop.permute.xlu0 %1174
        %v1178 = vsel %vm591, %v1173, 0
        %1180 = vmatprep.subr.mxu0 0.0
        %1181 = vmatpush1.msra.mxu0 %v1175
        %1182 = vmatprep.subr.mxu0 0.0
        %1183 = vmatpush1.msra.mxu0 0.0
        %1184 = vmatprep.subr.mxu0 0.0
        %1185 = vmatpush1.msra.mxu0 0.0
        %1186 = vmatprep.subr.mxu0 0.0
        %1187 = vmatpush1.msra.mxu0 0.0
        %1188 = vmatprep.subr.mxu0 0.0
        %1189 = vmatpush1.msra.mxu0 0.0
        %1190 = vmatprep.subr.mxu0 0.0
        %1191 = vmatpush1.msra.mxu0 0.0
        %1192 = vmatprep.subr.mxu0 0.0
        %1193 = vmatpush1.msra.mxu0 0.0
        %1194 = vmatprep.subr.mxu0 0.0
        %1195 = vmatpush1.msra.mxu0 0.0
        %1196 = vmatprep.subr.mxu0 0.0
        %1197 = vmatpush1.msra.mxu0 0.0
        %1198 = vmatprep.subr.mxu0 0.0
        %1199 = vmatpush1.msra.mxu0 0.0
        %1200 = vmatprep.subr.mxu0 0.0
        %1201 = vmatpush1.msra.mxu0 0.0
        %1202 = vmatprep.subr.mxu0 0.0
        %1203 = vmatpush1.msra.mxu0 0.0
        %1204 = vmatprep.subr.mxu0 0.0
        %1205 = vmatpush1.msra.mxu0 0.0
        %1206 = vmatprep.subr.mxu0 0.0
        %1207 = vmatpush1.msra.mxu0 0.0
        %1208 = vmatprep.subr.mxu0 0.0
        %1209 = vmatpush1.msra.mxu0 0.0
        %1210 = vmatprep.subr.mxu0 0.0
        %1211 = vmatpush1.msra.mxu0 0.0
        %1212 = vmatprep.subr.mxu0 0.0
        %1213 = vmatpush1.msra.mxu0 0.0
        %1214 = vmatprep.subr.mxu0 0.0
        %1215 = vmatpush1.msra.mxu0 0.0
        %1216 = vmatprep.subr.mxu0 0.0
        %1217 = vmatpush1.msra.mxu0 0.0
        %1218 = vmatprep.subr.mxu0 0.0
        %1219 = vmatpush1.msra.mxu0 0.0
        %1220 = vmatprep.subr.mxu0 0.0
        %1221 = vmatpush1.msra.mxu0 0.0
        %1222 = vmatprep.subr.mxu0 0.0
        %1223 = vmatpush1.msra.mxu0 0.0
        %1224 = vmatprep.subr.mxu0 0.0
        %1225 = vmatpush1.msra.mxu0 0.0
        %1226 = vmatprep.subr.mxu0 0.0
        %1227 = vmatpush1.msra.mxu0 0.0
        %1228 = vmatprep.subr.mxu0 0.0
        %1229 = vmatpush1.msra.mxu0 0.0
        %1230 = vmatprep.subr.mxu0 0.0
        %1231 = vmatpush1.msra.mxu0 0.0
        %1232 = vmatprep.subr.mxu0 0.0
        %1233 = vmatpush1.msra.mxu0 0.0
        %1234 = vmatprep.subr.mxu0 0.0
        %1235 = vmatpush1.msra.mxu0 0.0
        %1236 = vmatprep.subr.mxu0 0.0
        %1237 = vmatpush1.msra.mxu0 0.0
        %1238 = vmatprep.subr.mxu0 0.0
        %1239 = vmatpush1.msra.mxu0 0.0
        %1240 = vmatprep.subr.mxu0 0.0
        %1241 = vmatpush1.msra.mxu0 0.0
        %1242 = vmatprep.subr.mxu0 0.0
        %1243 = vmatpush1.msra.mxu0 0.0
        %1244 = vmatprep.mubr.f32.mxu0 0.0
        %1245 = vmatmul.mubr.f32.gmra.mrb[0].mxu0 %v1178
        %v1246 = vpop.f32.mrb[0].mxu0
        %v1247 = vadd.f32 0.0, %v1246
        %v1248 = vpop.f32.mrb[0].mxu0
        %1249 = vdwg.mxu0
        %v1251 = vsel %vm591, %v1247, 0
        %1253 = vmatprep.subr.mxu0 0.0
        %1254 = vmatpush1.msra.mxu0 %v589
        %1255 = vmatprep.subr.mxu0 0.0
        %1256 = vmatpush1.msra.mxu0 0.0
        %1257 = vmatprep.subr.mxu0 0.0
        %1258 = vmatpush1.msra.mxu0 0.0
        %1259 = vmatprep.subr.mxu0 0.0
        %1260 = vmatpush1.msra.mxu0 0.0
        %1261 = vmatprep.subr.mxu0 0.0
        %1262 = vmatpush1.msra.mxu0 0.0
        %1263 = vmatprep.subr.mxu0 0.0
        %1264 = vmatpush1.msra.mxu0 0.0
        %1265 = vmatprep.subr.mxu0 0.0
        %1266 = vmatpush1.msra.mxu0 0.0
        %1267 = vmatprep.subr.mxu0 0.0
        %1268 = vmatpush1.msra.mxu0 0.0
        %1269 = vmatprep.subr.mxu0 0.0
        %1270 = vmatpush1.msra.mxu0 0.0
        %1271 = vmatprep.subr.mxu0 0.0
        %1272 = vmatpush1.msra.mxu0 0.0
        %1273 = vmatprep.subr.mxu0 0.0
        %1274 = vmatpush1.msra.mxu0 0.0
        %1275 = vmatprep.subr.mxu0 0.0
        %1276 = vmatpush1.msra.mxu0 0.0
        %1277 = vmatprep.subr.mxu0 0.0
        %1278 = vmatpush1.msra.mxu0 0.0
        %1279 = vmatprep.subr.mxu0 0.0
        %1280 = vmatpush1.msra.mxu0 0.0
        %1281 = vmatprep.subr.mxu0 0.0
        %1282 = vmatpush1.msra.mxu0 0.0
        %1283 = vmatprep.subr.mxu0 0.0
        %1284 = vmatpush1.msra.mxu0 0.0
        %1285 = vmatprep.subr.mxu0 0.0
        %1286 = vmatpush1.msra.mxu0 0.0
        %1287 = vmatprep.subr.mxu0 0.0
        %1288 = vmatpush1.msra.mxu0 0.0
        %1289 = vmatprep.subr.mxu0 0.0
        %1290 = vmatpush1.msra.mxu0 0.0
        %1291 = vmatprep.subr.mxu0 0.0
        %1292 = vmatpush1.msra.mxu0 0.0
        %1293 = vmatprep.subr.mxu0 0.0
        %1294 = vmatpush1.msra.mxu0 0.0
        %1295 = vmatprep.subr.mxu0 0.0
        %1296 = vmatpush1.msra.mxu0 0.0
        %1297 = vmatprep.subr.mxu0 0.0
        %1298 = vmatpush1.msra.mxu0 0.0
        %1299 = vmatprep.subr.mxu0 0.0
        %1300 = vmatpush1.msra.mxu0 0.0
        %1301 = vmatprep.subr.mxu0 0.0
        %1302 = vmatpush1.msra.mxu0 0.0
        %1303 = vmatprep.subr.mxu0 0.0
        %1304 = vmatpush1.msra.mxu0 0.0
        %1305 = vmatprep.subr.mxu0 0.0
        %1306 = vmatpush1.msra.mxu0 0.0
        %1307 = vmatprep.subr.mxu0 0.0
        %1308 = vmatpush1.msra.mxu0 0.0
        %1309 = vmatprep.subr.mxu0 0.0
        %1310 = vmatpush1.msra.mxu0 0.0
        %1311 = vmatprep.subr.mxu0 0.0
        %1312 = vmatpush1.msra.mxu0 0.0
        %1313 = vmatprep.subr.mxu0 0.0
        %1314 = vmatpush1.msra.mxu0 0.0
        %1315 = vmatprep.subr.mxu0 0.0
        %1316 = vmatpush1.msra.mxu0 0.0
        %1317 = vmatprep.mubr.f32.mxu0 0.0
        %1318 = vmatmul.mubr.f32.gmra.mrb[0].mxu0 %v1251
        %v1319 = vpop.f32.mrb[0].mxu0
        %v1320 = vadd.f32 0.0, %v1319
        %v1321 = vpop.f32.mrb[0].mxu0
        %1322 = vdwg.mxu0
        %v1323 = vadd.f32 %v1075, %v1320
        %1324 = vrot.lane.b32.xlu0 %v409, 104
        %v1325 = vpop.permute.xlu0 %1324
        %1326 = vrot.lane.b32.xlu0 %v496, 104
        %v1327 = vpop.permute.xlu0 %1326
        %v1328 = vsel %vm591, %v1325, 0
        %v1330 = vsel %vm591, %v1327, 0
        %1332 = vmatprep.subr.mxu0 0.0
        %1333 = vmatpush1.xpose.msra.mxu0 %v1330
        %1334 = vmatprep.subr.mxu0 0.0
        %1335 = vmatpush1.xpose.msra.mxu0 0.0
        %1336 = vmatprep.subr.mxu0 0.0
        %1337 = vmatpush1.xpose.msra.mxu0 0.0
        %1338 = vmatprep.subr.mxu0 0.0
        %1339 = vmatpush1.xpose.msra.mxu0 0.0
        %1340 = vmatprep.subr.mxu0 0.0
        %1341 = vmatpush1.xpose.msra.mxu0 0.0
        %1342 = vmatprep.subr.mxu0 0.0
        %1343 = vmatpush1.xpose.msra.mxu0 0.0
        %1344 = vmatprep.subr.mxu0 0.0
        %1345 = vmatpush1.xpose.msra.mxu0 0.0
        %1346 = vmatprep.subr.mxu0 0.0
        %1347 = vmatpush1.xpose.msra.mxu0 0.0
        %1348 = vmatprep.subr.mxu0 0.0
        %1349 = vmatpush1.xpose.msra.mxu0 0.0
        %1350 = vmatprep.subr.mxu0 0.0
        %1351 = vmatpush1.xpose.msra.mxu0 0.0
        %1352 = vmatprep.subr.mxu0 0.0
        %1353 = vmatpush1.xpose.msra.mxu0 0.0
        %1354 = vmatprep.subr.mxu0 0.0
        %1355 = vmatpush1.xpose.msra.mxu0 0.0
        %1356 = vmatprep.subr.mxu0 0.0
        %1357 = vmatpush1.xpose.msra.mxu0 0.0
        %1358 = vmatprep.subr.mxu0 0.0
        %1359 = vmatpush1.xpose.msra.mxu0 0.0
        %1360 = vmatprep.subr.mxu0 0.0
        %1361 = vmatpush1.xpose.msra.mxu0 0.0
        %1362 = vmatprep.subr.mxu0 0.0
        %1363 = vmatpush1.xpose.msra.mxu0 0.0
        %1364 = vmatprep.subr.mxu0 0.0
        %1365 = vmatpush1.xpose.msra.mxu0 0.0
        %1366 = vmatprep.subr.mxu0 0.0
        %1367 = vmatpush1.xpose.msra.mxu0 0.0
        %1368 = vmatprep.subr.mxu0 0.0
        %1369 = vmatpush1.xpose.msra.mxu0 0.0
        %1370 = vmatprep.subr.mxu0 0.0
        %1371 = vmatpush1.xpose.msra.mxu0 0.0
        %1372 = vmatprep.subr.mxu0 0.0
        %1373 = vmatpush1.xpose.msra.mxu0 0.0
        %1374 = vmatprep.subr.mxu0 0.0
        %1375 = vmatpush1.xpose.msra.mxu0 0.0
        %1376 = vmatprep.subr.mxu0 0.0
        %1377 = vmatpush1.xpose.msra.mxu0 0.0
        %1378 = vmatprep.subr.mxu0 0.0
        %1379 = vmatpush1.xpose.msra.mxu0 0.0
        %1380 = vmatprep.subr.mxu0 0.0
        %1381 = vmatpush1.xpose.msra.mxu0 0.0
        %1382 = vmatprep.subr.mxu0 0.0
        %1383 = vmatpush1.xpose.msra.mxu0 0.0
        %1384 = vmatprep.subr.mxu0 0.0
        %1385 = vmatpush1.xpose.msra.mxu0 0.0
        %1386 = vmatprep.subr.mxu0 0.0
        %1387 = vmatpush1.xpose.msra.mxu0 0.0
        %1388 = vmatprep.subr.mxu0 0.0
        %1389 = vmatpush1.xpose.msra.mxu0 0.0
        %1390 = vmatprep.subr.mxu0 0.0
        %1391 = vmatpush1.xpose.msra.mxu0 0.0
        %1392 = vmatprep.subr.mxu0 0.0
        %1393 = vmatpush1.xpose.msra.mxu0 0.0
        %1394 = vmatprep.subr.mxu0 0.0
        %1395 = vmatpush1.xpose.msra.mxu0 0.0
        %1396 = vmatprep.mubr.f32.mxu0 0.0
        %1397 = vmatmul.mubr.f32.gmra.mrb[0].mxu0 %v1328
        %v1398 = vpop.f32.mrb[0].mxu0
        %v1399 = vadd.f32 0.0, %v1398
        %v1400 = vpop.f32.mrb[0].mxu0
        %1401 = vdwg.mxu0
        %v1402 = vmul.f32 %v1399, 0.17677669
        %v1403 = vsel %vm591, %v1402, -inf
        %1404 = vmax.xlane.f32.xlu0 %v1403
        %v1405 = vpop.xlane.xlu0 %1404
        %v1406 = vsub.f32 %v1402, %v1405
        %v1407 = vmul.f32 %v1406, 1.442695
        %v1408 = vpow.pop %v1407
        %v1409 = vsel %vm591, %v1408, 0.0
        %1410 = vadd.xlane.f32.xlu0 %v1409
        %v1411 = vpop.xlane.xlu0 %1410
        %v1412 = vrcp.pop %v1411
        %v1413 = vmul.f32 %v1408, %v1412
        %v1414 = vxor.u32 %v1413, 2147483648
        %v1415 = vmul.f32 %v1414, 1.442695
        %v1416 = vpow.pop %v1415
        %v1417 = vadd.f32 %v1416, 1.0
        %v1418 = vrcp.pop %v1417
        %v1419 = vmul.f32 1.0, %v1418
        %1420 = vrot.lane.b32.xlu0 %v583, 104
        %v1421 = vpop.permute.xlu0 %1420
        %v1424 = vsel %vm591, %v1419, 0
        %1426 = vmatprep.subr.mxu0 0.0
        %1427 = vmatpush1.msra.mxu0 %v1421
        %1428 = vmatprep.subr.mxu0 0.0
        %1429 = vmatpush1.msra.mxu0 0.0
        %1430 = vmatprep.subr.mxu0 0.0
        %1431 = vmatpush1.msra.mxu0 0.0
        %1432 = vmatprep.subr.mxu0 0.0
        %1433 = vmatpush1.msra.mxu0 0.0
        %1434 = vmatprep.subr.mxu0 0.0
        %1435 = vmatpush1.msra.mxu0 0.0
        %1436 = vmatprep.subr.mxu0 0.0
        %1437 = vmatpush1.msra.mxu0 0.0
        %1438 = vmatprep.subr.mxu0 0.0
        %1439 = vmatpush1.msra.mxu0 0.0
        %1440 = vmatprep.subr.mxu0 0.0
        %1441 = vmatpush1.msra.mxu0 0.0
        %1442 = vmatprep.subr.mxu0 0.0
        %1443 = vmatpush1.msra.mxu0 0.0
        %1444 = vmatprep.subr.mxu0 0.0
        %1445 = vmatpush1.msra.mxu0 0.0
        %1446 = vmatprep.subr.mxu0 0.0
        %1447 = vmatpush1.msra.mxu0 0.0
        %1448 = vmatprep.subr.mxu0 0.0
        %1449 = vmatpush1.msra.mxu0 0.0
        %1450 = vmatprep.subr.mxu0 0.0
        %1451 = vmatpush1.msra.mxu0 0.0
        %1452 = vmatprep.subr.mxu0 0.0
        %1453 = vmatpush1.msra.mxu0 0.0
        %1454 = vmatprep.subr.mxu0 0.0
        %1455 = vmatpush1.msra.mxu0 0.0
        %1456 = vmatprep.subr.mxu0 0.0
        %1457 = vmatpush1.msra.mxu0 0.0
        %1458 = vmatprep.subr.mxu0 0.0
        %1459 = vmatpush1.msra.mxu0 0.0
        %1460 = vmatprep.subr.mxu0 0.0
        %1461 = vmatpush1.msra.mxu0 0.0
        %1462 = vmatprep.subr.mxu0 0.0
        %1463 = vmatpush1.msra.mxu0 0.0
        %1464 = vmatprep.subr.mxu0 0.0
        %1465 = vmatpush1.msra.mxu0 0.0
        %1466 = vmatprep.subr.mxu0 0.0
        %1467 = vmatpush1.msra.mxu0 0.0
        %1468 = vmatprep.subr.mxu0 0.0
        %1469 = vmatpush1.msra.mxu0 0.0
        %1470 = vmatprep.subr.mxu0 0.0
        %1471 = vmatpush1.msra.mxu0 0.0
        %1472 = vmatprep.subr.mxu0 0.0
        %1473 = vmatpush1.msra.mxu0 0.0
        %1474 = vmatprep.subr.mxu0 0.0
        %1475 = vmatpush1.msra.mxu0 0.0
        %1476 = vmatprep.subr.mxu0 0.0
        %1477 = vmatpush1.msra.mxu0 0.0
        %1478 = vmatprep.subr.mxu0 0.0
        %1479 = vmatpush1.msra.mxu0 0.0
        %1480 = vmatprep.subr.mxu0 0.0
        %1481 = vmatpush1.msra.mxu0 0.0
        %1482 = vmatprep.subr.mxu0 0.0
        %1483 = vmatpush1.msra.mxu0 0.0
        %1484 = vmatprep.subr.mxu0 0.0
        %1485 = vmatpush1.msra.mxu0 0.0
        %1486 = vmatprep.subr.mxu0 0.0
        %1487 = vmatpush1.msra.mxu0 0.0
        %1488 = vmatprep.subr.mxu0 0.0
        %1489 = vmatpush1.msra.mxu0 0.0
        %1490 = vmatprep.mubr.f32.mxu0 0.0
        %1491 = vmatmul.mubr.f32.gmra.mrb[0].mxu0 %v1424
        %v1492 = vpop.f32.mrb[0].mxu0
        %v1493 = vadd.f32 0.0, %v1492
        %v1494 = vpop.f32.mrb[0].mxu0
        %1495 = vdwg.mxu0
        %v1497 = vsel %vm591, %v1493, 0
        %1499 = vmatprep.subr.mxu0 0.0
        %1500 = vmatpush1.msra.mxu0 %v590
        %1501 = vmatprep.subr.mxu0 0.0
        %1502 = vmatpush1.msra.mxu0 0.0
        %1503 = vmatprep.subr.mxu0 0.0
        %1504 = vmatpush1.msra.mxu0 0.0
        %1505 = vmatprep.subr.mxu0 0.0
        %1506 = vmatpush1.msra.mxu0 0.0
        %1507 = vmatprep.subr.mxu0 0.0
        %1508 = vmatpush1.msra.mxu0 0.0
        %1509 = vmatprep.subr.mxu0 0.0
        %1510 = vmatpush1.msra.mxu0 0.0
        %1511 = vmatprep.subr.mxu0 0.0
        %1512 = vmatpush1.msra.mxu0 0.0
        %1513 = vmatprep.subr.mxu0 0.0
        %1514 = vmatpush1.msra.mxu0 0.0
        %1515 = vmatprep.subr.mxu0 0.0
        %1516 = vmatpush1.msra.mxu0 0.0
        %1517 = vmatprep.subr.mxu0 0.0
        %1518 = vmatpush1.msra.mxu0 0.0
        %1519 = vmatprep.subr.mxu0 0.0
        %1520 = vmatpush1.msra.mxu0 0.0
        %1521 = vmatprep.subr.mxu0 0.0
        %1522 = vmatpush1.msra.mxu0 0.0
        %1523 = vmatprep.subr.mxu0 0.0
        %1524 = vmatpush1.msra.mxu0 0.0
        %1525 = vmatprep.subr.mxu0 0.0
        %1526 = vmatpush1.msra.mxu0 0.0
        %1527 = vmatprep.subr.mxu0 0.0
        %1528 = vmatpush1.msra.mxu0 0.0
        %1529 = vmatprep.subr.mxu0 0.0
        %1530 = vmatpush1.msra.mxu0 0.0
        %1531 = vmatprep.subr.mxu0 0.0
        %1532 = vmatpush1.msra.mxu0 0.0
        %1533 = vmatprep.subr.mxu0 0.0
        %1534 = vmatpush1.msra.mxu0 0.0
        %1535 = vmatprep.subr.mxu0 0.0
        %1536 = vmatpush1.msra.mxu0 0.0
        %1537 = vmatprep.subr.mxu0 0.0
        %1538 = vmatpush1.msra.mxu0 0.0
        %1539 = vmatprep.subr.mxu0 0.0
        %1540 = vmatpush1.msra.mxu0 0.0
        %1541 = vmatprep.subr.mxu0 0.0
        %1542 = vmatpush1.msra.mxu0 0.0
        %1543 = vmatprep.subr.mxu0 0.0
        %1544 = vmatpush1.msra.mxu0 0.0
        %1545 = vmatprep.subr.mxu0 0.0
        %1546 = vmatpush1.msra.mxu0 0.0
        %1547 = vmatprep.subr.mxu0 0.0
        %1548 = vmatpush1.msra.mxu0 0.0
        %1549 = vmatprep.subr.mxu0 0.0
        %1550 = vmatpush1.msra.mxu0 0.0
        %1551 = vmatprep.subr.mxu0 0.0
        %1552 = vmatpush1.msra.mxu0 0.0
        %1553 = vmatprep.subr.mxu0 0.0
        %1554 = vmatpush1.msra.mxu0 0.0
        %1555 = vmatprep.subr.mxu0 0.0
        %1556 = vmatpush1.msra.mxu0 0.0
        %1557 = vmatprep.subr.mxu0 0.0
        %1558 = vmatpush1.msra.mxu0 0.0
        %1559 = vmatprep.subr.mxu0 0.0
        %1560 = vmatpush1.msra.mxu0 0.0
        %1561 = vmatprep.subr.mxu0 0.0
        %1562 = vmatpush1.msra.mxu0 0.0
        %1563 = vmatprep.mubr.f32.mxu0 0.0
        %1564 = vmatmul.mubr.f32.gmra.mrb[0].mxu0 %v1497
        %v1565 = vpop.f32.mrb[0].mxu0
        %v1566 = vadd.f32 0.0, %v1565
        %v1567 = vpop.f32.mrb[0].mxu0
        %1568 = vdwg.mxu0
        %v1569 = vadd.f32 %v1323, %v1566
        %s1570 = scalar_lea.vmem %s4, 3
        %v1571 = vld [vmem:[%s1570] sm:$0x1]
        %v1573 = vlaneseq
        %v1574 = vshrl.u32 %v1573, 7
        %v1575 = vsub.s32 0, %v1574
        %v1576 = vrot.slane %v1571, %v1575
        %v1578 = vadd.f32 %v1569, %v1576
        %1579 = vst.msk [vmem:[%s325] sm:$0xff] %vm338, %v1578
        %s1580 = sand.u32 %s154, 1
        %s1581 = scalar_lea.sflag [#allocation4], %s1580
        %s1582 = sand.u32 %s154, 1
        %s1583 = smul.addr %s1582, 8
        %s1584 = scalar_lea.vmem [#allocation10], %s1583
        // Predicated region
        $region57: #{tpu_custom_call.1} parent=39 // pred_check
          %p1585 = pneg %p164
        $region58: #{tpu_custom_call.1} parent=39 // pred_check_branch
          %1587 = sbr.rel (%p1585) target = $region60
        $region59: #{tpu_custom_call.1} parent=39 // pred_region
          %s1589 = ssub.s32 128, 128
          %1590 = vsyncadd %s1581, %s1589
          %s1591 = smul.addr %s26, 128
          %s1592 = scalar_lea.hbm %s5, %s1591
          %s1594 = sshll.u32 %s1584, 4
          %s1595 = int_to_ptr.vmem [resolvable:$true] %s1594
          %1597 = dma.vmem_to_hbm [thread:$0]  %s1595, 128, %s1592, %s1581
        $region60: #{tpu_custom_call.1} parent=39 // pred_fallthru
          _
      $region40: #{tpu_custom_call.1} parent=5 // pred_fallthru
        _
      %p1598 = scmp.le.s32.totalorder 2, %s21
      // Predicated region
      $region61: #{tpu_custom_call.1} parent=5 // pred_check
        %p1599 = pneg %p1598
      $region62: #{tpu_custom_call.1} parent=5 // pred_check_branch
        %1601 = sbr.rel (%p1599) target = $region64
      $region63: #{tpu_custom_call.1} parent=5 // pred_region
        %s1602 = ssub.s32 %s21, 2
        // Predicated region
        $region65: #{tpu_custom_call.1} parent=63 // pred_check
          %p1603 = pneg %p170
        $region66: #{tpu_custom_call.1} parent=63 // pred_check_branch
          %1605 = sbr.rel (%p1603) target = $region68
        $region67: #{tpu_custom_call.1} parent=63 // pred_region
          %s1606 = sand.u32 %s155, 1
          %s1607 = scalar_lea.sflag [#allocation4], %s1606
          %s1608 = sand.u32 %s155, 1
          %s1609 = smul.addr %s1608, 8
          %s1610 = scalar_lea.vmem [#allocation10], %s1609
          %1611 = dma.done %s1607, 128
        $region68: #{tpu_custom_call.1} parent=63 // pred_fallthru
          _
      $region64: #{tpu_custom_call.1} parent=5 // pred_fallthru
        _
    $region6: #{tpu_custom_call.1} parent=1 // loop_footer
      %s25 = sadd.s32 1, %s21
    $region7: #{tpu_custom_call.1} parent=1 // loop_footer_branch
      %20 = sbr.rel target = $region3
    $region8: #{tpu_custom_call.1} parent=1 // loop_exit
      _
    %1612 = vsyncpa [#allocation3], 1
    %s1613 = scalar_lea.sflag [#allocation3], 1
    %1614 = vsyncpa %s1613, 1
    %1615 = vsyncpa [#allocation6], 1
    %s1616 = scalar_lea.sflag [#allocation6], 1
    %1617 = vsyncpa %s1616, 1
    %1618 = vsyncpa [#allocation9], 1
    %1619 = vsyncpa [#allocation4], 1
    %s1620 = scalar_lea.sflag [#allocation4], 1
    %1621 = vsyncpa %s1620, 1

</llo_original>
